<compile_context>
chip_gen: v6e
topology: v6e:2x2x1
jax: 0.10.0
libtpu: 0.0.40
codegen_flags: <defaults>
</compile_context>

<pallas_src>
import math
import functools

import jax
import jax.numpy as jnp
from jax.experimental import pallas as pl
from jax.experimental.pallas import tpu as pltpu


# ----------------------------------------------------------------------------
# Shared attention + output-projection core (traced inside the kernel).
# ----------------------------------------------------------------------------
def _attention_and_output(q, k, v, hmask, wo_ref, bo_ref, out_ref, attn_ref,
                          *, Bb, Sq, Sk, H, d_k):
    D = H * d_k
    G = H * Bb                       # combined (head, batch) matmul batch axis
    cd = wo_ref.dtype                # bf16 compute dtype for MXU operands
    f32 = jnp.float32

    # Per-head zero masks over the full D lane axis: no lane-axis head slicing,
    # no relayouts; the zero-padded K dimension is free on the MXU.
    mask4 = hmask.reshape(H, 1, 1, D)                                   # f32
    qg = (q.reshape(1, Bb, Sq, D) * mask4).reshape(G, Sq, D).astype(cd)
    kg = jnp.broadcast_to(k.reshape(1, Bb, Sk, D),
                          (H, Bb, Sk, D)).reshape(G, Sk, D).astype(cd)
    vg = (v.reshape(1, Bb, Sk, D) * mask4).reshape(G, Sk, D).astype(cd)

    # Scores for every (head, batch) pair in one batched MXU contraction.
    # (1/sqrt(d_k) is already folded into the Q projection weights.)
    s = jax.lax.dot_general(qg, kg, (((2,), (2,)), ((0,), (0,))),
                            preferred_element_type=f32)                 # (G,Sq,Sk)

    # Softmax in f32 with exact normalization (rows of the returned attention
    # sum to 1; dropout is identity in eval mode, so the reference's
    # post-softmax renormalization is a no-op and is dropped).
    m = jnp.max(s, axis=-1, keepdims=True)
    e = jnp.exp(s - m)
    p = e / jnp.sum(e, axis=-1, keepdims=True)                          # (G,Sq,Sk)

    # Context: V is head-masked, so each head only writes its own d_k output
    # columns; summing over the head axis reassembles (B*Sq, D) directly -
    # no lane-axis concatenate and no (B,H,S,d_k)->(B,S,D) transpose.
    ctx = jax.lax.dot_general(p.astype(cd), vg, (((2,), (1,)), ((0,), (0,))),
                              preferred_element_type=f32)               # (G,Sq,D)
    ctx = ctx.reshape(H, Bb, Sq, D).sum(axis=0).reshape(Bb * Sq, D)

    out = jnp.dot(ctx.astype(cd), wo_ref[...],
                  preferred_element_type=f32) + bo_ref[...]
    out_ref[...] = out.astype(out_ref.dtype)

    if attn_ref is not None:
        # Lane-dense probability slab (B*Sq, H*Sk): one unmasked store.
        ph = p.reshape(H, Bb, Sq, Sk)
        slab = jnp.concatenate(
            [ph[h].reshape(Bb * Sq, Sk) for h in range(H)], axis=-1)
        attn_ref[...] = slab.astype(attn_ref.dtype)


# ----------------------------------------------------------------------------
# Kernels: general (distinct q/k/v inputs) and self-attention fast path.
# ----------------------------------------------------------------------------
def _mha_kernel(xq_ref, xk_ref, xv_ref, wqkv_ref, bqkv_ref, wo_ref, bo_ref,
                hmask_ref, out_ref, *maybe_attn, Bb, Sq, Sk, H, d_k):
    D = H * d_k
    cd = wqkv_ref.dtype
    f32 = jnp.float32
    w = wqkv_ref[...]                                   # (D, 3D) bf16, pre-T
    b = bqkv_ref[...]                                   # (1, 3D) f32
    q = jnp.dot(xq_ref[...].astype(cd), w[:, 0 * D:1 * D],
                preferred_element_type=f32) + b[:, 0 * D:1 * D]
    k = jnp.dot(xk_ref[...].astype(cd), w[:, 1 * D:2 * D],
                preferred_element_type=f32) + b[:, 1 * D:2 * D]
    v = jnp.dot(xv_ref[...].astype(cd), w[:, 2 * D:3 * D],
                preferred_element_type=f32) + b[:, 2 * D:3 * D]
    attn_ref = maybe_attn[0] if maybe_attn else None
    _attention_and_output(q, k, v, hmask_ref[...], wo_ref, bo_ref, out_ref,
                          attn_ref, Bb=Bb, Sq=Sq, Sk=Sk, H=H, d_k=d_k)


def _mha_kernel_self(x_ref, wqkv_ref, bqkv_ref, wo_ref, bo_ref, hmask_ref,
                     out_ref, *maybe_attn, Bb, S, H, d_k):
    D = H * d_k
    cd = wqkv_ref.dtype
    f32 = jnp.float32
    # Single fused (B*S, D) @ (D, 3D) projection for the self-attention case.
    qkv = jnp.dot(x_ref[...].astype(cd), wqkv_ref[...],
                  preferred_element_type=f32) + bqkv_ref[...]
    q = qkv[:, 0 * D:1 * D]
    k = qkv[:, 1 * D:2 * D]
    v = qkv[:, 2 * D:3 * D]
    attn_ref = maybe_attn[0] if maybe_attn else None
    _attention_and_output(q, k, v, hmask_ref[...], wo_ref, bo_ref, out_ref,
                          attn_ref, Bb=Bb, Sq=S, Sk=S, H=H, d_k=d_k)


# ----------------------------------------------------------------------------
# Wrapper around pallas_call.
# ----------------------------------------------------------------------------
def _default_batch_parts(B):
    # v7x has 2 TensorCores per chip: give each one a batch half via a
    # 2-point "parallel" grid.  v5e/v6e have 1 TC, where extra grid steps are
    # pure per-step overhead (~0.35 us each) -> single step.
    try:
        kind = jax.devices()[0].device_kind.lower()
    except Exception:
        return 1
    if ("v7" in kind or "tpu7" in kind) and B % 2 == 0:
        return 2
    return 1


def mha_forward(query, key, value, wqkv_t, bqkv, wo_t, bo, head_mask,
                num_heads, *, need_attn=True, batch_parts=1):
    B, Sq, D = query.shape
    Sk = key.shape[1]
    H = num_heads
    d_k = D // H

    parts = batch_parts if (batch_parts > 0 and B % batch_parts == 0) else 1
    Bb = B // parts
    Mq, Mk = Bb * Sq, Bb * Sk

    self_attn = (query is key) and (key is value)

    xq = query.reshape(B * Sq, D)
    xk = key.reshape(B * Sk, D)
    xv = value.reshape(B * Sk, D)

    out_shapes = [jax.ShapeDtypeStruct((B * Sq, D), query.dtype)]
    out_specs = [pl.BlockSpec((Mq, D), lambda i: (i, 0))]
    if need_attn:
        out_shapes.append(jax.ShapeDtypeStruct((B * Sq, H * Sk), jnp.float32))
        out_specs.append(pl.BlockSpec((Mq, H * Sk), lambda i: (i, 0)))

    # Weights / biases / head mask stay resident across the (parallel) grid.
    w_specs = [
        pl.BlockSpec((D, 3 * D), lambda i: (0, 0)),
        pl.BlockSpec((1, 3 * D), lambda i: (0, 0)),
        pl.BlockSpec((D, D), lambda i: (0, 0)),
        pl.BlockSpec((1, D), lambda i: (0, 0)),
        pl.BlockSpec((H, D), lambda i: (0, 0)),
    ]

    if self_attn:
        kern = functools.partial(_mha_kernel_self, Bb=Bb, S=Sq, H=H, d_k=d_k)
        in_specs = tuple([pl.BlockSpec((Mq, D), lambda i: (i, 0))] + w_specs)
        args = (xq, wqkv_t, bqkv, wo_t, bo, head_mask)
    else:
        kern = functools.partial(_mha_kernel, Bb=Bb, Sq=Sq, Sk=Sk, H=H, d_k=d_k)
        in_specs = tuple([pl.BlockSpec((Mq, D), lambda i: (i, 0)),
                          pl.BlockSpec((Mk, D), lambda i: (i, 0)),
                          pl.BlockSpec((Mk, D), lambda i: (i, 0))] + w_specs)
        args = (xq, xk, xv, wqkv_t, bqkv, wo_t, bo, head_mask)

    results = pl.pallas_call(
        kern,
        out_shape=tuple(out_shapes),
        grid=(parts,),
        in_specs=in_specs,
        out_specs=tuple(out_specs),
        compiler_params=pltpu.CompilerParams(
            dimension_semantics=("parallel",)),
    )(*args)

    out = results[0].reshape(B, Sq, D)
    if need_attn:
        attn = results[1].reshape(B, Sq, H, Sk).transpose(0, 2, 1, 3)
        return out, attn
    return out, None


# ----------------------------------------------------------------------------
# Module wrapper (PyTorch nn.Linear parameter semantics: W is (d_out, d_in)).
# ----------------------------------------------------------------------------
class MultiHeadAttentionPallas:
    def __init__(self, d_model=32, num_heads=4, dropout=0.1, key=None):
        assert d_model % num_heads == 0
        self.d_model = d_model
        self.num_heads = num_heads
        self.d_k = d_model // num_heads
        self.scale = math.sqrt(self.d_k)
        self.dropout = dropout          # eval-mode identity (see TODO above)

        if key is None:
            key = jax.random.PRNGKey(42)
        keys = jax.random.split(key, 8)
        bound = 1.0 / math.sqrt(d_model)

        def init_linear(kw, kb):
            w = jax.random.uniform(kw, (d_model, d_model), jnp.float32, -bound, bound)
            b = jax.random.uniform(kb, (d_model,), jnp.float32, -bound, bound)
            return w, b

        # PyTorch-layout f32 parameters (source of truth; used by the reference).
        self.Wq, self.bq = init_linear(keys[0], keys[1])
        self.Wk, self.bk = init_linear(keys[2], keys[3])
        self.Wv, self.bv = init_linear(keys[4], keys[5])
        self.Wo, self.bo = init_linear(keys[6], keys[7])

        # Kernel-layout parameters (built exactly once here): pre-transposed to
        # (d_in, d_out), QKV stacked, 1/sqrt(d_k) folded into the Q projection,
        # bf16 MXU weights, f32 biases.
        inv_scale = 1.0 / self.scale
        self.Wqkv_t = jnp.concatenate(
            [self.Wq.T * inv_scale, self.Wk.T, self.Wv.T],
            axis=1).astype(jnp.bfloat16)                              # (D, 3D)
        self.bqkv = jnp.concatenate(
            [self.bq * inv_scale, self.bk, self.bv]).reshape(1, 3 * d_model)
        self.Wo_t = self.Wo.T.astype(jnp.bfloat16)                    # (D, D)
        self.bo_row = self.bo.reshape(1, d_model)

        # Static per-head lane mask: head_mask[h, c] = 1.0 iff column c belongs
        # to head h.  Lets the kernel contract over the full D axis per head.
        col_head = jnp.arange(d_model) // self.d_k
        self.head_mask = (col_head[None, :] ==
                          jnp.arange(num_heads)[:, None]).astype(jnp.float32)

    def __call__(self, query, key, value, need_attn=True):
        parts = _default_batch_parts(query.shape[0])
        return mha_forward(query, key, value,
                           self.Wqkv_t, self.bqkv, self.Wo_t, self.bo_row,
                           self.head_mask, self.num_heads,
                           need_attn=need_attn, batch_parts=parts)


# ----------------------------------------------------------------------------
# Reference in plain JAX (faithful to the PyTorch module, eval mode, f32).
# ----------------------------------------------------------------------------
def reference_forward(mha, query, key, value):
    B, Sq, D = query.shape
    Sk = key.shape[1]
    H, d_k = mha.num_heads, mha.d_k

    def lin(x, w, b):
        return x @ w.T + b

    q = lin(query, mha.Wq, mha.bq).reshape(B, Sq, H, d_k).transpose(0, 2, 1, 3)
    k = lin(key, mha.Wk, mha.bk).reshape(B, Sk, H, d_k).transpose(0, 2, 1, 3)
    v = lin(value, mha.Wv, mha.bv).reshape(B, Sk, H, d_k).transpose(0, 2, 1, 3)

    scores = jnp.einsum("bhqd,bhkd->bhqk", q, k) / mha.scale
    attn = jax.nn.softmax(scores, axis=-1)
    attn = attn / jnp.sum(attn, axis=-1, keepdims=True)   # identity in eval mode
    ctx = jnp.einsum("bhqk,bhkd->bhqd", attn, v)
    ctx = ctx.transpose(0, 2, 1, 3).reshape(B, Sq, D)
    out = lin(ctx, mha.Wo, mha.bo)
    return out, attn


if __name__ == "__main__":
    B, S, d_model, num_heads = 2, 8, 32, 4

    mha = MultiHeadAttentionPallas(d_model=d_model, num_heads=num_heads,
                                   key=jax.random.PRNGKey(42))

    k0, k1, k2 = jax.random.split(jax.random.PRNGKey(0), 3)
    query = jax.random.normal(k0, (B, S, d_model), jnp.float32)
    key = jax.random.normal(k1, (B, S, d_model), jnp.float32)
    value = jax.random.normal(k2, (B, S, d_model), jnp.float32)

    # General (cross-attention style) path.
    out, attn = mha(query, key, value)
    out = jax.block_until_ready(out)
    attn = jax.block_until_ready(attn)

    ref_out, ref_attn = reference_forward(mha, query, key, value)
    assert out.shape == (B, S, d_model)
    assert attn.shape == (B, num_heads, S, S)
    # Tolerances account for bf16 MXU operands (accumulation is f32).
    assert jnp.allclose(out, ref_out, atol=3e-2, rtol=3e-2), \
        float(jnp.max(jnp.abs(out - ref_out)))
    assert jnp.allclose(attn, ref_attn, atol=1e-2, rtol=1e-2), \
        float(jnp.max(jnp.abs(attn - ref_attn)))

    # Self-attention fast path (single fused QKV projection).
    out_s, attn_s = mha(query, query, query)
    out_s = jax.block_until_ready(out_s)
    ref_out_s, ref_attn_s = reference_forward(mha, query, query, query)
    assert jnp.allclose(out_s, ref_out_s, atol=3e-2, rtol=3e-2), \
        float(jnp.max(jnp.abs(out_s - ref_out_s)))
    assert jnp.allclose(attn_s, ref_attn_s, atol=1e-2, rtol=1e-2), \
        float(jnp.max(jnp.abs(attn_s - ref_attn_s)))

    print("KERNEL_OK")
</pallas_src>

<mosaic_0001>
module attributes {stable_mosaic.version = 11 : i64} {
  func.func @_mha_kernel(%arg0: i32, %arg1: memref<16x32xf32, #tpu.memory_space<vmem>>, %arg2: memref<16x32xf32, #tpu.memory_space<vmem>>, %arg3: memref<16x32xf32, #tpu.memory_space<vmem>>, %arg4: memref<32x96xbf16, #tpu.memory_space<vmem>>, %arg5: memref<1x96xf32, #tpu.memory_space<vmem>>, %arg6: memref<32x32xbf16, #tpu.memory_space<vmem>>, %arg7: memref<1x32xf32, #tpu.memory_space<vmem>>, %arg8: memref<4x32xf32, #tpu.memory_space<vmem>>, %arg9: memref<16x32xf32, #tpu.memory_space<vmem>>, %arg10: memref<16x32xf32, #tpu.memory_space<vmem>>) attributes {dimension_semantics = [#tpu.dimension_semantics<parallel>], iteration_bounds = array<i64: 1>, scalar_prefetch = 0 : i64, scratch_operands = 0 : i64, tpu.core_type = #tpu.core_type<tc>, window_params = [{transform_indices = @transform_0, window_bounds = array<i64: 16, 32>}, {transform_indices = @transform_1, window_bounds = array<i64: 16, 32>}, {transform_indices = @transform_2, window_bounds = array<i64: 16, 32>}, {pipeline_mode = #tpu.pipeline_mode<synchronous>, transform_indices = @transform_3, window_bounds = array<i64: 32, 96>}, {pipeline_mode = #tpu.pipeline_mode<synchronous>, transform_indices = @transform_4, window_bounds = array<i64: 1, 96>}, {pipeline_mode = #tpu.pipeline_mode<synchronous>, transform_indices = @transform_5, window_bounds = array<i64: 32, 32>}, {pipeline_mode = #tpu.pipeline_mode<synchronous>, transform_indices = @transform_6, window_bounds = array<i64: 1, 32>}, {pipeline_mode = #tpu.pipeline_mode<synchronous>, transform_indices = @transform_7, window_bounds = array<i64: 4, 32>}, {transform_indices = @transform_8, window_bounds = array<i64: 16, 32>}, {transform_indices = @transform_9, window_bounds = array<i64: 16, 32>}]} {
    %c0 = arith.constant 0 : index
    %c0_0 = arith.constant 0 : index
    %0 = vector.load %arg4[%c0, %c0_0] : memref<32x96xbf16, #tpu.memory_space<vmem>>, vector<32x96xbf16>
    %c0_1 = arith.constant 0 : index
    %c0_2 = arith.constant 0 : index
    %1 = vector.load %arg5[%c0_1, %c0_2] : memref<1x96xf32, #tpu.memory_space<vmem>>, vector<1x96xf32>
    %c0_3 = arith.constant 0 : index
    %c0_4 = arith.constant 0 : index
    %2 = vector.load %arg1[%c0_3, %c0_4] : memref<16x32xf32, #tpu.memory_space<vmem>>, vector<16x32xf32>
    %3 = arith.truncf %2 : vector<16x32xf32> to vector<16x32xbf16>
    %4 = vector.extract_strided_slice %0 {offsets = [0, 0], sizes = [32, 32], strides = [1, 1]} : vector<32x96xbf16> to vector<32x32xbf16>
    %cst = arith.constant dense<0.000000e+00> : vector<16x32xf32>
    %5 = tpu.matmul %3, %4, %cst {dimension_numbers = #tpu.dot_dimension_numbers<[1], [0], [0], [1], [0, 0, 1, 1], [], []>} : vector<16x32xbf16>, vector<32x32xbf16>, vector<16x32xf32> -> vector<16x32xf32>
    %6 = vector.extract_strided_slice %1 {offsets = [0, 0], sizes = [1, 32], strides = [1, 1]} : vector<1x96xf32> to vector<1x32xf32>
    %7 = vector.broadcast %6 : vector<1x32xf32> to vector<16x32xf32>
    %8 = arith.addf %5, %7 : vector<16x32xf32>
    %c0_5 = arith.constant 0 : index
    %c0_6 = arith.constant 0 : index
    %9 = vector.load %arg2[%c0_5, %c0_6] : memref<16x32xf32, #tpu.memory_space<vmem>>, vector<16x32xf32>
    %10 = arith.truncf %9 : vector<16x32xf32> to vector<16x32xbf16>
    %11 = vector.extract_strided_slice %0 {offsets = [0, 32], sizes = [32, 32], strides = [1, 1]} : vector<32x96xbf16> to vector<32x32xbf16>
    %cst_7 = arith.constant dense<0.000000e+00> : vector<16x32xf32>
    %12 = tpu.matmul %10, %11, %cst_7 {dimension_numbers = #tpu.dot_dimension_numbers<[1], [0], [0], [1], [0, 0, 1, 1], [], []>} : vector<16x32xbf16>, vector<32x32xbf16>, vector<16x32xf32> -> vector<16x32xf32>
    %13 = vector.extract_strided_slice %1 {offsets = [0, 32], sizes = [1, 32], strides = [1, 1]} : vector<1x96xf32> to vector<1x32xf32>
    %14 = vector.broadcast %13 : vector<1x32xf32> to vector<16x32xf32>
    %15 = arith.addf %12, %14 : vector<16x32xf32>
    %c0_8 = arith.constant 0 : index
    %c0_9 = arith.constant 0 : index
    %16 = vector.load %arg3[%c0_8, %c0_9] : memref<16x32xf32, #tpu.memory_space<vmem>>, vector<16x32xf32>
    %17 = arith.truncf %16 : vector<16x32xf32> to vector<16x32xbf16>
    %18 = vector.extract_strided_slice %0 {offsets = [0, 64], sizes = [32, 32], strides = [1, 1]} : vector<32x96xbf16> to vector<32x32xbf16>
    %cst_10 = arith.constant dense<0.000000e+00> : vector<16x32xf32>
    %19 = tpu.matmul %17, %18, %cst_10 {dimension_numbers = #tpu.dot_dimension_numbers<[1], [0], [0], [1], [0, 0, 1, 1], [], []>} : vector<16x32xbf16>, vector<32x32xbf16>, vector<16x32xf32> -> vector<16x32xf32>
    %20 = vector.extract_strided_slice %1 {offsets = [0, 64], sizes = [1, 32], strides = [1, 1]} : vector<1x96xf32> to vector<1x32xf32>
    %21 = vector.broadcast %20 : vector<1x32xf32> to vector<16x32xf32>
    %22 = arith.addf %19, %21 : vector<16x32xf32>
    %c0_11 = arith.constant 0 : index
    %c0_12 = arith.constant 0 : index
    %23 = vector.load %arg8[%c0_11, %c0_12] : memref<4x32xf32, #tpu.memory_space<vmem>>, vector<4x32xf32>
    %24 = vector.shape_cast %23 : vector<4x32xf32> to vector<4x1x1x32xf32>
    %25 = vector.shape_cast %8 : vector<16x32xf32> to vector<1x2x8x32xf32>
    %26 = vector.broadcast %25 : vector<1x2x8x32xf32> to vector<4x2x8x32xf32>
    %27 = vector.broadcast %24 : vector<4x1x1x32xf32> to vector<4x2x8x32xf32>
    %28 = arith.mulf %26, %27 : vector<4x2x8x32xf32>
    %29 = vector.shape_cast %28 : vector<4x2x8x32xf32> to vector<8x8x32xf32>
    %30 = arith.truncf %29 : vector<8x8x32xf32> to vector<8x8x32xbf16>
    %31 = vector.shape_cast %15 : vector<16x32xf32> to vector<1x2x8x32xf32>
    %32 = vector.shape_cast %31 : vector<1x2x8x32xf32> to vector<1x2x8x32xf32>
    %33 = vector.broadcast %32 : vector<1x2x8x32xf32> to vector<4x2x8x32xf32>
    %34 = vector.shape_cast %33 : vector<4x2x8x32xf32> to vector<8x8x32xf32>
    %35 = arith.truncf %34 : vector<8x8x32xf32> to vector<8x8x32xbf16>
    %36 = vector.shape_cast %22 : vector<16x32xf32> to vector<1x2x8x32xf32>
    %37 = vector.broadcast %36 : vector<1x2x8x32xf32> to vector<4x2x8x32xf32>
    %38 = vector.broadcast %24 : vector<4x1x1x32xf32> to vector<4x2x8x32xf32>
    %39 = arith.mulf %37, %38 : vector<4x2x8x32xf32>
    %40 = vector.shape_cast %39 : vector<4x2x8x32xf32> to vector<8x8x32xf32>
    %41 = arith.truncf %40 : vector<8x8x32xf32> to vector<8x8x32xbf16>
    %cst_13 = arith.constant dense<0.000000e+00> : vector<8x8x8xf32>
    %42 = tpu.matmul %30, %35, %cst_13 {dimension_numbers = #tpu.dot_dimension_numbers<[2], [2], [1], [1], [0, 0, 0, 1, 1, 1], [0], [0]>} : vector<8x8x32xbf16>, vector<8x8x32xbf16>, vector<8x8x8xf32> -> vector<8x8x8xf32>
    %cst_14 = arith.constant dense<0xFF800000> : vector<8x8xf32>
    %43 = vector.multi_reduction <maximumf>, %42, %cst_14 [2] : vector<8x8x8xf32> to vector<8x8xf32>
    %44 = vector.shape_cast %43 : vector<8x8xf32> to vector<8x8x1xf32>
    %45 = vector.broadcast %44 : vector<8x8x1xf32> to vector<8x8x8xf32>
    %46 = arith.subf %42, %45 : vector<8x8x8xf32>
    %47 = math.exp %46 : vector<8x8x8xf32>
    %cst_15 = arith.constant dense<0.000000e+00> : vector<8x8xf32>
    %48 = vector.multi_reduction <add>, %47, %cst_15 [2] : vector<8x8x8xf32> to vector<8x8xf32>
    %49 = vector.shape_cast %48 : vector<8x8xf32> to vector<8x8x1xf32>
    %50 = vector.broadcast %49 : vector<8x8x1xf32> to vector<8x8x8xf32>
    %51 = arith.divf %47, %50 : vector<8x8x8xf32>
    %52 = arith.truncf %51 : vector<8x8x8xf32> to vector<8x8x8xbf16>
    %cst_16 = arith.constant dense<0.000000e+00> : vector<8x8x32xf32>
    %53 = tpu.matmul %52, %41, %cst_16 {dimension_numbers = #tpu.dot_dimension_numbers<[2], [1], [1], [2], [0, 0, 0, 1, 1, 2], [0], [0]>} : vector<8x8x8xbf16>, vector<8x8x32xbf16>, vector<8x8x32xf32> -> vector<8x8x32xf32>
    %54 = vector.shape_cast %53 : vector<8x8x32xf32> to vector<4x2x8x32xf32>
    %cst_17 = arith.constant dense<0.000000e+00> : vector<2x8x32xf32>
    %55 = vector.multi_reduction <add>, %54, %cst_17 [0] : vector<4x2x8x32xf32> to vector<2x8x32xf32>
    %56 = vector.shape_cast %55 : vector<2x8x32xf32> to vector<16x32xf32>
    %57 = arith.truncf %56 : vector<16x32xf32> to vector<16x32xbf16>
    %c0_18 = arith.constant 0 : index
    %c0_19 = arith.constant 0 : index
    %58 = vector.load %arg6[%c0_18, %c0_19] : memref<32x32xbf16, #tpu.memory_space<vmem>>, vector<32x32xbf16>
    %cst_20 = arith.constant dense<0.000000e+00> : vector<16x32xf32>
    %59 = tpu.matmul %57, %58, %cst_20 {dimension_numbers = #tpu.dot_dimension_numbers<[1], [0], [0], [1], [0, 0, 1, 1], [], []>} : vector<16x32xbf16>, vector<32x32xbf16>, vector<16x32xf32> -> vector<16x32xf32>
    %c0_21 = arith.constant 0 : index
    %c0_22 = arith.constant 0 : index
    %60 = vector.load %arg7[%c0_21, %c0_22] : memref<1x32xf32, #tpu.memory_space<vmem>>, vector<1x32xf32>
    %61 = vector.broadcast %60 : vector<1x32xf32> to vector<16x32xf32>
    %62 = arith.addf %59, %61 : vector<16x32xf32>
    %c0_23 = arith.constant 0 : index
    %c0_24 = arith.constant 0 : index
    %63 = vector.load %arg9[%c0_23, %c0_24] : memref<16x32xf32, #tpu.memory_space<vmem>>, vector<16x32xf32>
    tpu.vector_store %arg9[%c0_23, %c0_24], %62 {strides = array<i32>} : memref<16x32xf32, #tpu.memory_space<vmem>>, vector<16x32xf32>,
    %64 = vector.shape_cast %51 : vector<8x8x8xf32> to vector<4x2x8x8xf32>
    %65 = vector.extract_strided_slice %64 {offsets = [0, 0, 0, 0], sizes = [1, 2, 8, 8], strides = [1, 1, 1, 1]} : vector<4x2x8x8xf32> to vector<1x2x8x8xf32>
    %66 = vector.shape_cast %65 : vector<1x2x8x8xf32> to vector<2x8x8xf32>
    %67 = vector.shape_cast %66 : vector<2x8x8xf32> to vector<16x8xf32>
    %68 = vector.extract_strided_slice %64 {offsets = [1, 0, 0, 0], sizes = [1, 2, 8, 8], strides = [1, 1, 1, 1]} : vector<4x2x8x8xf32> to vector<1x2x8x8xf32>
    %69 = vector.shape_cast %68 : vector<1x2x8x8xf32> to vector<2x8x8xf32>
    %70 = vector.shape_cast %69 : vector<2x8x8xf32> to vector<16x8xf32>
    %71 = vector.extract_strided_slice %64 {offsets = [2, 0, 0, 0], sizes = [1, 2, 8, 8], strides = [1, 1, 1, 1]} : vector<4x2x8x8xf32> to vector<1x2x8x8xf32>
    %72 = vector.shape_cast %71 : vector<1x2x8x8xf32> to vector<2x8x8xf32>
    %73 = vector.shape_cast %72 : vector<2x8x8xf32> to vector<16x8xf32>
    %74 = vector.extract_strided_slice %64 {offsets = [3, 0, 0, 0], sizes = [1, 2, 8, 8], strides = [1, 1, 1, 1]} : vector<4x2x8x8xf32> to vector<1x2x8x8xf32>
    %75 = vector.shape_cast %74 : vector<1x2x8x8xf32> to vector<2x8x8xf32>
    %76 = vector.shape_cast %75 : vector<2x8x8xf32> to vector<16x8xf32>
    %77 = tpu.concatenate %67, %70, %73, %76 in 1 : vector<16x8xf32>, vector<16x8xf32>, vector<16x8xf32>, vector<16x8xf32> -> vector<16x32xf32>
    %c0_25 = arith.constant 0 : index
    %c0_26 = arith.constant 0 : index
    %78 = vector.load %arg10[%c0_25, %c0_26] : memref<16x32xf32, #tpu.memory_space<vmem>>, vector<16x32xf32>
    tpu.vector_store %arg10[%c0_25, %c0_26], %77 {strides = array<i32>} : memref<16x32xf32, #tpu.memory_space<vmem>>, vector<16x32xf32>,
    return
  }
  func.func @transform_0(%arg0: i32) -> (i32, i32) {
    %c0_i32 = arith.constant 0 : i32
    %c0_i32_0 = arith.constant 0 : i32
    return %arg0, %c0_i32 : i32, i32
  }
  func.func @transform_1(%arg0: i32) -> (i32, i32) {
    %c0_i32 = arith.constant 0 : i32
    %c0_i32_0 = arith.constant 0 : i32
    return %arg0, %c0_i32 : i32, i32
  }
  func.func @transform_2(%arg0: i32) -> (i32, i32) {
    %c0_i32 = arith.constant 0 : i32
    %c0_i32_0 = arith.constant 0 : i32
    return %arg0, %c0_i32 : i32, i32
  }
  func.func @transform_3(%arg0: i32) -> (i32, i32) {
    %c0_i32 = arith.constant 0 : i32
    %c0_i32_0 = arith.constant 0 : i32
    %c0_i32_1 = arith.constant 0 : i32
    return %c0_i32, %c0_i32_0 : i32, i32
  }
  func.func @transform_4(%arg0: i32) -> (i32, i32) {
    %c0_i32 = arith.constant 0 : i32
    %c0_i32_0 = arith.constant 0 : i32
    %c0_i32_1 = arith.constant 0 : i32
    return %c0_i32, %c0_i32_0 : i32, i32
  }
  func.func @transform_5(%arg0: i32) -> (i32, i32) {
    %c0_i32 = arith.constant 0 : i32
    %c0_i32_0 = arith.constant 0 : i32
    %c0_i32_1 = arith.constant 0 : i32
    return %c0_i32, %c0_i32_0 : i32, i32
  }
  func.func @transform_6(%arg0: i32) -> (i32, i32) {
    %c0_i32 = arith.constant 0 : i32
    %c0_i32_0 = arith.constant 0 : i32
    %c0_i32_1 = arith.constant 0 : i32
    return %c0_i32, %c0_i32_0 : i32, i32
  }
  func.func @transform_7(%arg0: i32) -> (i32, i32) {
    %c0_i32 = arith.constant 0 : i32
    %c0_i32_0 = arith.constant 0 : i32
    %c0_i32_1 = arith.constant 0 : i32
    return %c0_i32, %c0_i32_0 : i32, i32
  }
  func.func @transform_8(%arg0: i32) -> (i32, i32) {
    %c0_i32 = arith.constant 0 : i32
    %c0_i32_0 = arith.constant 0 : i32
    return %arg0, %c0_i32 : i32, i32
  }
  func.func @transform_9(%arg0: i32) -> (i32, i32) {
    %c0_i32 = arith.constant 0 : i32
    %c0_i32_0 = arith.constant 0 : i32
    return %arg0, %c0_i32 : i32, i32
  }
}

</mosaic_0001>

<llo_original>
// kernel: tpu_custom_call.1
$region0: #{tpu_custom_call.1}
  #allocation0 [shape = 'u32[]', space=smem, size = 0x4, offset = 0x4, fixed_abs, tag = 'smem constant byte address 0x4 - core index']
  #allocation1 [shape = 'u32[144,128]{1,0:T(1,128)}', space=vmem, size = 0x12000, scoped, tag = 'internal scratch']
  %s0 = inlined_call_operand.hbm [shape: f32[16,32], index: 0, kind: input, shape index: {}]
  %s1 = inlined_call_operand.hbm [shape: f32[16,32], index: 1, kind: input, shape index: {}]
  %s2 = inlined_call_operand.hbm [shape: f32[16,32], index: 2, kind: input, shape index: {}]
  %s3 = inlined_call_operand.hbm [shape: bf16[32,96], index: 3, kind: input, shape index: {}]
  %s4 = inlined_call_operand.vmem [shape: f32[1,96], index: 4, kind: input, shape index: {}]
  %s5 = inlined_call_operand.hbm [shape: bf16[32,32], index: 5, kind: input, shape index: {}]
  %s6 = inlined_call_operand.vmem [shape: f32[1,32], index: 6, kind: input, shape index: {}]
  %s7 = inlined_call_operand.vmem [shape: f32[4,32], index: 7, kind: input, shape index: {}]
  %s8 = inlined_call_operand.hbm [shape: f32[16,32], index: 8, kind: output, shape index: {0}]
  %s9 = inlined_call_operand.hbm [shape: f32[16,32], index: 9, kind: output, shape index: {1}]
  %10 = xla_tuple %s8, %s9
  %s11 = sld [smem:[#allocation0]]
  $region70: #{tpu_custom_call.1} parent=0
    _
  %s13 = ssub.s32 1, %s11
  %s14 = scalar_select 0, %s13, %s11
  $region1: #{tpu_custom_call.1} parent=0
    #allocation2 [shape = 'u8[8192]{0}', space=vmem, size = 0x2000, scoped, tag = 'input window, operand 0, single buffered']
    #allocation3 [shape = 's32[1]{0}', space=sflag, size = 0x4, scoped, tag = 'scoped memory for tpu_custom_call.1']
    #allocation4 [shape = 's32[1]{0}', space=sflag, size = 0x4, scoped, tag = 'scoped memory for tpu_custom_call.1']
    #allocation5 [shape = 'u8[8192]{0}', space=vmem, size = 0x2000, scoped, tag = 'input window, operand 1, single buffered']
    #allocation6 [shape = 's32[1]{0}', space=sflag, size = 0x4, scoped, tag = 'scoped memory for tpu_custom_call.1']
    #allocation7 [shape = 'u8[8192]{0}', space=vmem, size = 0x2000, scoped, tag = 'input window, operand 2, single buffered']
    #allocation8 [shape = 'u8[8192]{0}', space=vmem, size = 0x2000, scoped, tag = 'input window, operand 3, single buffered']
    #allocation9 [shape = 's32[1]{0}', space=sflag, size = 0x4, scoped, tag = 'scoped memory for tpu_custom_call.1']
    #allocation10 [shape = 'u8[8192]{0}', space=vmem, size = 0x2000, scoped, tag = 'input window, operand 5, single buffered']
    #allocation11 [shape = 'u8[8192]{0}', space=vmem, size = 0x2000, scoped, tag = 'output window, operand 0, single buffered']
    #allocation12 [shape = 'u8[8192]{0}', space=vmem, size = 0x2000, scoped, tag = 'output window, operand 1, single buffered']
    #allocation13 [shape = 's32[1]{0}', space=sflag, size = 0x4, scoped, tag = 'scoped memory for tpu_custom_call.1']
    %15 = vsyncpa [#allocation3], 0
    %16 = vsyncpa [#allocation6], 0
    %17 = vsyncpa [#allocation9], 0
    %18 = vsyncpa [#allocation4], 0
    %19 = vsyncpa [#allocation13], 0
    // Predicated region
    $region2: #{tpu_custom_call.1} parent=1 // pred_check
      _
    $region3: #{tpu_custom_call.1} parent=1 // pred_check_branch
      %21 = sbr.rel (0) target = $region5
    $region4: #{tpu_custom_call.1} parent=1 // pred_region
      %s23 = ssub.s32 256, 256
      %24 = vsyncadd [#allocation3], %s23
      %s25 = sshll.u32 [#allocation2], 4
      %s26 = int_to_ptr.vmem [resolvable:$true] %s25
      %31 = dma.hbm_to_vmem [thread:$0]  %s0, 256, %s26, [#allocation3], 128, 128, 8
    $region5: #{tpu_custom_call.1} parent=1 // pred_fallthru
      _
    // Predicated region
    $region6: #{tpu_custom_call.1} parent=1 // pred_check
      _
    $region7: #{tpu_custom_call.1} parent=1 // pred_check_branch
      %33 = sbr.rel (0) target = $region9
    $region8: #{tpu_custom_call.1} parent=1 // pred_region
      %s35 = ssub.s32 256, 256
      %36 = vsyncadd [#allocation6], %s35
      %s37 = sshll.u32 [#allocation5], 4
      %s38 = int_to_ptr.vmem [resolvable:$true] %s37
      %43 = dma.hbm_to_vmem [thread:$0]  %s1, 256, %s38, [#allocation6], 128, 128, 8
    $region9: #{tpu_custom_call.1} parent=1 // pred_fallthru
      _
    // Predicated region
    $region10: #{tpu_custom_call.1} parent=1 // pred_check
      _
    $region11: #{tpu_custom_call.1} parent=1 // pred_check_branch
      %45 = sbr.rel (0) target = $region13
    $region12: #{tpu_custom_call.1} parent=1 // pred_region
      %s47 = ssub.s32 256, 256
      %48 = vsyncadd [#allocation6], %s47
      %s49 = sshll.u32 [#allocation7], 4
      %s50 = int_to_ptr.vmem [resolvable:$true] %s49
      %55 = dma.hbm_to_vmem [thread:$0]  %s2, 256, %s50, [#allocation6], 128, 128, 8
    $region13: #{tpu_custom_call.1} parent=1 // pred_fallthru
      _
    // Predicated region
    $region14: #{tpu_custom_call.1} parent=1 // pred_check
      _
    $region15: #{tpu_custom_call.1} parent=1 // pred_check_branch
      %57 = sbr.rel (0) target = $region17
    $region16: #{tpu_custom_call.1} parent=1 // pred_region
      %s59 = ssub.s32 256, 256
      %60 = vsyncadd [#allocation9], %s59
      %s61 = sshll.u32 [#allocation8], 4
      %s62 = int_to_ptr.vmem [resolvable:$true] %s61
      %67 = dma.hbm_to_vmem [thread:$0]  %s3, 256, %s62, [#allocation9], 64, 64, 4
    $region17: #{tpu_custom_call.1} parent=1 // pred_fallthru
      _
    // Predicated region
    $region18: #{tpu_custom_call.1} parent=1 // pred_check
      _
    $region19: #{tpu_custom_call.1} parent=1 // pred_check_branch
      %69 = sbr.rel (0) target = $region21
    $region20: #{tpu_custom_call.1} parent=1 // pred_region
      _
    $region21: #{tpu_custom_call.1} parent=1 // pred_fallthru
      _
    // Predicated region
    $region22: #{tpu_custom_call.1} parent=1 // pred_check
      _
    $region23: #{tpu_custom_call.1} parent=1 // pred_check_branch
      %71 = sbr.rel (0) target = $region25
    $region24: #{tpu_custom_call.1} parent=1 // pred_region
      %s73 = ssub.s32 256, 256
      %74 = vsyncadd [#allocation9], %s73
      %s75 = sshll.u32 [#allocation10], 4
      %s76 = int_to_ptr.vmem [resolvable:$true] %s75
      %81 = dma.hbm_to_vmem [thread:$0]  %s5, 256, %s76, [#allocation9], 64, 64, 4
    $region25: #{tpu_custom_call.1} parent=1 // pred_fallthru
      _
    // Predicated region
    $region26: #{tpu_custom_call.1} parent=1 // pred_check
      _
    $region27: #{tpu_custom_call.1} parent=1 // pred_check_branch
      %83 = sbr.rel (0) target = $region29
    $region28: #{tpu_custom_call.1} parent=1 // pred_region
      _
    $region29: #{tpu_custom_call.1} parent=1 // pred_fallthru
      _
    // Predicated region
    $region30: #{tpu_custom_call.1} parent=1 // pred_check
      _
    $region31: #{tpu_custom_call.1} parent=1 // pred_check_branch
      %85 = sbr.rel (0) target = $region33
    $region32: #{tpu_custom_call.1} parent=1 // pred_region
      _
    $region33: #{tpu_custom_call.1} parent=1 // pred_fallthru
      _
    // Predicated region
    $region34: #{tpu_custom_call.1} parent=1 // pred_check
      _
    $region35: #{tpu_custom_call.1} parent=1 // pred_check_branch
      %87 = sbr.rel (0) target = $region37
    $region36: #{tpu_custom_call.1} parent=1 // pred_region
      %88 = dma.done [#allocation3], 256
    $region37: #{tpu_custom_call.1} parent=1 // pred_fallthru
      _
    // Predicated region
    $region38: #{tpu_custom_call.1} parent=1 // pred_check
      _
    $region39: #{tpu_custom_call.1} parent=1 // pred_check_branch
      %90 = sbr.rel (0) target = $region41
    $region40: #{tpu_custom_call.1} parent=1 // pred_region
      %91 = dma.done [#allocation6], 256
    $region41: #{tpu_custom_call.1} parent=1 // pred_fallthru
      _
    // Predicated region
    $region42: #{tpu_custom_call.1} parent=1 // pred_check
      _
    $region43: #{tpu_custom_call.1} parent=1 // pred_check_branch
      %93 = sbr.rel (0) target = $region45
    $region44: #{tpu_custom_call.1} parent=1 // pred_region
      %94 = dma.done [#allocation6], 256
    $region45: #{tpu_custom_call.1} parent=1 // pred_fallthru
      _
    // Predicated region
    $region46: #{tpu_custom_call.1} parent=1 // pred_check
      _
    $region47: #{tpu_custom_call.1} parent=1 // pred_check_branch
      %96 = sbr.rel (0) target = $region49
    $region48: #{tpu_custom_call.1} parent=1 // pred_region
      %97 = dma.done [#allocation9], 256
    $region49: #{tpu_custom_call.1} parent=1 // pred_fallthru
      _
    // Predicated region
    $region50: #{tpu_custom_call.1} parent=1 // pred_check
      _
    $region51: #{tpu_custom_call.1} parent=1 // pred_check_branch
      %99 = sbr.rel (0) target = $region53
    $region52: #{tpu_custom_call.1} parent=1 // pred_region
      %100 = dma.done [#allocation9], 256
    $region53: #{tpu_custom_call.1} parent=1 // pred_fallthru
      _
    %v102 = vld [vmem:[#allocation8] sm:$0xf]
    %v103 = vld [vmem:[#allocation8 + $0x4] sm:$0xf]
    %v104 = vld [vmem:[#allocation8 + $0x8] sm:$0xf]
    %v105 = vld [vmem:[#allocation8 + $0xc] sm:$0xf]
    %v106 = vld [vmem:[%s4] sm:$0x1]
    %v107 = vld [vmem:[#allocation2] sm:$0xff]
    %v108 = vld [vmem:[#allocation2 + $0x8] sm:$0xff]
    %v109 = vpack.c.bf16 %v108, %v107
    %v111 = vlaneseq
    %v112 = vshrl.u32 %v111, 7
    %v113 = vsub.s32 0, %v112
    %v114 = vrot.slane %v106, %v113
    %v120 = vunpack.c.l.b16 %v102
    %v121 = vunpack.c.l.b16 %v103
    %v122 = vunpack.c.l.b16 %v104
    %v123 = vunpack.c.l.b16 %v105
    %v124 = vpack.c.b16 %v121, %v120
    %v125 = vpack.c.b16 %v123, %v122
    %vm128 = vcmask 261120
    %v130 = vsel %vm128, %v109, 0
    %132 = vmatprep.subr.bf16.mxu0 0
    %133 = vmatpush1.bf16.msra.mxu0 0
    %134 = vmatprep.subr.bf16.mxu0 0
    %135 = vmatpush1.bf16.msra.mxu0 0
    %136 = vmatprep.subr.bf16.mxu0 0
    %137 = vmatpush1.bf16.msra.mxu0 0
    %138 = vmatprep.subr.bf16.mxu0 0
    %139 = vmatpush1.bf16.msra.mxu0 0
    %140 = vmatprep.subr.bf16.mxu0 0
    %141 = vmatpush1.bf16.msra.mxu0 0
    %142 = vmatprep.subr.bf16.mxu0 0
    %143 = vmatpush1.bf16.msra.mxu0 0
    %144 = vmatprep.subr.bf16.mxu0 0
    %145 = vmatpush1.bf16.msra.mxu0 %v125
    %146 = vmatprep.subr.bf16.mxu0 0
    %147 = vmatpush1.bf16.msra.mxu0 %v124
    %148 = vmatprep.subr.bf16.mxu0 0
    %149 = vmatpush2.bf16.msra.mxu0 0
    %150 = vmatprep.subr.bf16.mxu0 0
    %151 = vmatpush2.bf16.msra.mxu0 0
    %152 = vmatprep.subr.bf16.mxu0 0
    %153 = vmatpush2.bf16.msra.mxu0 0
    %154 = vmatprep.subr.bf16.mxu0 0
    %155 = vmatpush2.bf16.msra.mxu0 0
    %156 = vmatprep.subr.bf16.mxu0 0
    %157 = vmatpush2.bf16.msra.mxu0 0
    %158 = vmatprep.subr.bf16.mxu0 0
    %159 = vmatpush2.bf16.msra.mxu0 0
    %160 = vmatprep.subr.bf16.mxu0 0
    %161 = vmatpush2.bf16.msra.mxu0 0
    %162 = vmatprep.subr.bf16.mxu0 0
    %163 = vmatpush2.bf16.msra.mxu0 0
    %164 = vmatprep.mubr.bf16.mxu0 0
    %165 = vmatmul.mubr.bf16.gmra.mxu0 %v130
    %v166 = vpop.f32.mrf.mxu0
    %v167 = vadd.f32 %v114, %v166
    %v168 = vpop.f32.mrf.mxu0
    %v169 = vpop.f32.mrf.mxu0
    %v170 = vadd.f32 %v114, %v169
    %v171 = vpop.f32.mrf.mxu0
    %172 = vdwg.mxu0
    %v173 = vld [vmem:[#allocation5] sm:$0xff]
    %v174 = vld [vmem:[#allocation5 + $0x8] sm:$0xff]
    %v175 = vpack.c.bf16 %v174, %v173
    %176 = vrot.lane.b32.xlu0 %v124, 96
    %v177 = vpop.permute.xlu0 %176
    %178 = vrot.lane.b32.xlu0 %v125, 96
    %v179 = vpop.permute.xlu0 %178
    %182 = vrot.lane.b32.xlu0 %v114, 96
    %v183 = vpop.permute.xlu0 %182
    %v186 = vsel %vm128, %v175, 0
    %188 = vmatprep.subr.bf16.mxu0 0
    %189 = vmatpush1.bf16.msra.mxu0 0
    %190 = vmatprep.subr.bf16.mxu0 0
    %191 = vmatpush1.bf16.msra.mxu0 0
    %192 = vmatprep.subr.bf16.mxu0 0
    %193 = vmatpush1.bf16.msra.mxu0 0
    %194 = vmatprep.subr.bf16.mxu0 0
    %195 = vmatpush1.bf16.msra.mxu0 0
    %196 = vmatprep.subr.bf16.mxu0 0
    %197 = vmatpush1.bf16.msra.mxu0 0
    %198 = vmatprep.subr.bf16.mxu0 0
    %199 = vmatpush1.bf16.msra.mxu0 0
    %200 = vmatprep.subr.bf16.mxu0 0
    %201 = vmatpush1.bf16.msra.mxu0 %v179
    %202 = vmatprep.subr.bf16.mxu0 0
    %203 = vmatpush1.bf16.msra.mxu0 %v177
    %204 = vmatprep.subr.bf16.mxu0 0
    %205 = vmatpush2.bf16.msra.mxu0 0
    %206 = vmatprep.subr.bf16.mxu0 0
    %207 = vmatpush2.bf16.msra.mxu0 0
    %208 = vmatprep.subr.bf16.mxu0 0
    %209 = vmatpush2.bf16.msra.mxu0 0
    %210 = vmatprep.subr.bf16.mxu0 0
    %211 = vmatpush2.bf16.msra.mxu0 0
    %212 = vmatprep.subr.bf16.mxu0 0
    %213 = vmatpush2.bf16.msra.mxu0 0
    %214 = vmatprep.subr.bf16.mxu0 0
    %215 = vmatpush2.bf16.msra.mxu0 0
    %216 = vmatprep.subr.bf16.mxu0 0
    %217 = vmatpush2.bf16.msra.mxu0 0
    %218 = vmatprep.subr.bf16.mxu0 0
    %219 = vmatpush2.bf16.msra.mxu0 0
    %220 = vmatprep.mubr.bf16.mxu0 0
    %221 = vmatmul.mubr.bf16.gmra.mxu0 %v186
    %v222 = vpop.f32.mrf.mxu0
    %v223 = vadd.f32 %v183, %v222
    %v224 = vpop.f32.mrf.mxu0
    %v225 = vpop.f32.mrf.mxu0
    %v226 = vadd.f32 %v183, %v225
    %v227 = vpop.f32.mrf.mxu0
    %228 = vdwg.mxu0
    %v229 = vld [vmem:[#allocation7] sm:$0xff]
    %v230 = vld [vmem:[#allocation7 + $0x8] sm:$0xff]
    %v231 = vpack.c.bf16 %v230, %v229
    %232 = vrot.lane.b32.xlu0 %v124, 64
    %v233 = vpop.permute.xlu0 %232
    %234 = vrot.lane.b32.xlu0 %v125, 64
    %v235 = vpop.permute.xlu0 %234
    %238 = vrot.lane.b32.xlu0 %v114, 64
    %v239 = vpop.permute.xlu0 %238
    %v242 = vsel %vm128, %v231, 0
    %244 = vmatprep.subr.bf16.mxu0 0
    %245 = vmatpush1.bf16.msra.mxu0 0
    %246 = vmatprep.subr.bf16.mxu0 0
    %247 = vmatpush1.bf16.msra.mxu0 0
    %248 = vmatprep.subr.bf16.mxu0 0
    %249 = vmatpush1.bf16.msra.mxu0 0
    %250 = vmatprep.subr.bf16.mxu0 0
    %251 = vmatpush1.bf16.msra.mxu0 0
    %252 = vmatprep.subr.bf16.mxu0 0
    %253 = vmatpush1.bf16.msra.mxu0 0
    %254 = vmatprep.subr.bf16.mxu0 0
    %255 = vmatpush1.bf16.msra.mxu0 0
    %256 = vmatprep.subr.bf16.mxu0 0
    %257 = vmatpush1.bf16.msra.mxu0 %v235
    %258 = vmatprep.subr.bf16.mxu0 0
    %259 = vmatpush1.bf16.msra.mxu0 %v233
    %260 = vmatprep.subr.bf16.mxu0 0
    %261 = vmatpush2.bf16.msra.mxu0 0
    %262 = vmatprep.subr.bf16.mxu0 0
    %263 = vmatpush2.bf16.msra.mxu0 0
    %264 = vmatprep.subr.bf16.mxu0 0
    %265 = vmatpush2.bf16.msra.mxu0 0
    %266 = vmatprep.subr.bf16.mxu0 0
    %267 = vmatpush2.bf16.msra.mxu0 0
    %268 = vmatprep.subr.bf16.mxu0 0
    %269 = vmatpush2.bf16.msra.mxu0 0
    %270 = vmatprep.subr.bf16.mxu0 0
    %271 = vmatpush2.bf16.msra.mxu0 0
    %272 = vmatprep.subr.bf16.mxu0 0
    %273 = vmatpush2.bf16.msra.mxu0 0
    %274 = vmatprep.subr.bf16.mxu0 0
    %275 = vmatpush2.bf16.msra.mxu0 0
    %276 = vmatprep.mubr.bf16.mxu0 0
    %277 = vmatmul.mubr.bf16.gmra.mxu0 %v242
    %v278 = vpop.f32.mrf.mxu0
    %v279 = vadd.f32 %v239, %v278
    %v280 = vpop.f32.mrf.mxu0
    %v281 = vpop.f32.mrf.mxu0
    %v282 = vadd.f32 %v239, %v281
    %v283 = vpop.f32.mrf.mxu0
    %284 = vdwg.mxu0
    %v285 = vld [vmem:[%s7] sm:$0xf]
    %v288 = vunpack.c.l.s4 1966171168
    %v289 = vunpack.c.0.s8 %v288
    %v290 = vlaneseq
    %v291 = vshrl.u32 %v290, 7
    %v292 = vsub.s32 %v289, %v291
    %v293 = vrot.slane %v285, %v292
    %v294 = vcombine.high %v293, %v293
    %v296 = vunpack.c.l.s4 1966171168
    %v297 = vunpack.c.0.s8 %v296
    %v298 = vlaneseq
    %v299 = vshrl.u32 %v298, 7
    %v300 = vsub.s32 %v297, %v299
    %v301 = vrot.slane %v293, %v300
    %v303 = vunpack.c.l.s4 1966171168
    %v304 = vunpack.c.0.s8 %v303
    %v305 = vlaneseq
    %v306 = vshrl.u32 %v305, 7
    %v307 = vsub.s32 %v304, %v306
    %v308 = vrot.slane %v294, %v307
    %v309 = vcombine.high %v301, %v301
    %v310 = vcombine.high %v308, %v308
    %v311 = vlaneseq
    %v312 = vshrl.u32 %v311, 7
    %v313 = vsub.s32 0, %v312
    %v314 = vrot.slane %v301, %v313
    %v315 = vlaneseq
    %v316 = vshrl.u32 %v315, 7
    %v317 = vsub.s32 0, %v316
    %v318 = vrot.slane %v308, %v317
    %v319 = vlaneseq
    %v320 = vshrl.u32 %v319, 7
    %v321 = vsub.s32 0, %v320
    %v322 = vrot.slane %v309, %v321
    %v323 = vlaneseq
    %v324 = vshrl.u32 %v323, 7
    %v325 = vsub.s32 0, %v324
    %v326 = vrot.slane %v310, %v325
    %v331 = vmul.f32 %v167, %v314
    %v332 = vmul.f32 %v170, %v314
    %v333 = vmul.f32 %v167, %v318
    %v334 = vmul.f32 %v170, %v318
    %v335 = vmul.f32 %v167, %v322
    %v336 = vmul.f32 %v170, %v322
    %v337 = vmul.f32 %v167, %v326
    %v338 = vmul.f32 %v170, %v326
    %v339 = vpack.c.bf16 %v331, %v331
    %v340 = vpack.c.bf16 %v332, %v332
    %v341 = vpack.c.bf16 %v333, %v333
    %v342 = vpack.c.bf16 %v334, %v334
    %v343 = vpack.c.bf16 %v335, %v335
    %v344 = vpack.c.bf16 %v336, %v336
    %v345 = vpack.c.bf16 %v337, %v337
    %v346 = vpack.c.bf16 %v338, %v338
    %v347 = vpack.c.bf16 %v223, %v223
    %v348 = vpack.c.bf16 %v226, %v226
    %v349 = vmul.f32 %v279, %v314
    %v350 = vmul.f32 %v282, %v314
    %v351 = vmul.f32 %v279, %v318
    %v352 = vmul.f32 %v282, %v318
    %v353 = vmul.f32 %v279, %v322
    %v354 = vmul.f32 %v282, %v322
    %v355 = vmul.f32 %v279, %v326
    %v356 = vmul.f32 %v282, %v326
    %v357 = vpack.c.bf16 %v349, %v349
    %v358 = vpack.c.bf16 %v350, %v350
    %v359 = vpack.c.bf16 %v351, %v351
    %v360 = vpack.c.bf16 %v352, %v352
    %v361 = vpack.c.bf16 %v353, %v353
    %v362 = vpack.c.bf16 %v354, %v354
    %v363 = vpack.c.bf16 %v355, %v355
    %v364 = vpack.c.bf16 %v356, %v356
    %v366 = vsel %vm128, %v339, 0
    %v369 = vsel %vm128, %v347, 0
    %371 = vmatprep.subr.bf16.mxu0 0
    %372 = vmatpush1.bf16.xpose.msra.mxu0 0
    %373 = vmatprep.subr.bf16.mxu0 0
    %374 = vmatpush1.bf16.xpose.msra.mxu0 0
    %375 = vmatprep.subr.bf16.mxu0 0
    %376 = vmatpush1.bf16.xpose.msra.mxu0 0
    %377 = vmatprep.subr.bf16.mxu0 0
    %378 = vmatpush1.bf16.xpose.msra.mxu0 0
    %379 = vmatprep.subr.bf16.mxu0 0
    %380 = vmatpush1.bf16.xpose.msra.mxu0 0
    %381 = vmatprep.subr.bf16.mxu0 0
    %382 = vmatpush1.bf16.xpose.msra.mxu0 0
    %383 = vmatprep.subr.bf16.mxu0 0
    %384 = vmatpush1.bf16.xpose.msra.mxu0 0
    %385 = vmatprep.subr.bf16.mxu0 0
    %386 = vmatpush1.bf16.xpose.msra.mxu0 %v369
    %387 = vmatprep.subr.bf16.mxu0 0
    %388 = vmatpush2.bf16.xpose.msra.mxu0 0
    %389 = vmatprep.subr.bf16.mxu0 0
    %390 = vmatpush2.bf16.xpose.msra.mxu0 0
    %391 = vmatprep.subr.bf16.mxu0 0
    %392 = vmatpush2.bf16.xpose.msra.mxu0 0
    %393 = vmatprep.subr.bf16.mxu0 0
    %394 = vmatpush2.bf16.xpose.msra.mxu0 0
    %395 = vmatprep.subr.bf16.mxu0 0
    %396 = vmatpush2.bf16.xpose.msra.mxu0 0
    %397 = vmatprep.subr.bf16.mxu0 0
    %398 = vmatpush2.bf16.xpose.msra.mxu0 0
    %399 = vmatprep.subr.bf16.mxu0 0
    %400 = vmatpush2.bf16.xpose.msra.mxu0 0
    %401 = vmatprep.subr.bf16.mxu0 0
    %402 = vmatpush2.bf16.xpose.msra.mxu0 0
    %403 = vmatprep.mubr.bf16.mxu0 0
    %404 = vmatmul.mubr.bf16.gmra.mxu0 %v366
    %v405 = vpop.f32.mrf.mxu0
    %v406 = vadd.f32 0.0, %v405
    %v407 = vpop.f32.mrf.mxu0
    %v408 = vpop.f32.mrf.mxu0
    %v409 = vpop.f32.mrf.mxu0
    %410 = vdwg.mxu0
    %v412 = vsel %vm128, %v340, 0
    %v415 = vsel %vm128, %v348, 0
    %417 = vmatprep.subr.bf16.mxu0 0
    %418 = vmatpush1.bf16.xpose.msra.mxu0 0
    %419 = vmatprep.subr.bf16.mxu0 0
    %420 = vmatpush1.bf16.xpose.msra.mxu0 0
    %421 = vmatprep.subr.bf16.mxu0 0
    %422 = vmatpush1.bf16.xpose.msra.mxu0 0
    %423 = vmatprep.subr.bf16.mxu0 0
    %424 = vmatpush1.bf16.xpose.msra.mxu0 0
    %425 = vmatprep.subr.bf16.mxu0 0
    %426 = vmatpush1.bf16.xpose.msra.mxu0 0
    %427 = vmatprep.subr.bf16.mxu0 0
    %428 = vmatpush1.bf16.xpose.msra.mxu0 0
    %429 = vmatprep.subr.bf16.mxu0 0
    %430 = vmatpush1.bf16.xpose.msra.mxu0 0
    %431 = vmatprep.subr.bf16.mxu0 0
    %432 = vmatpush1.bf16.xpose.msra.mxu0 %v415
    %433 = vmatprep.subr.bf16.mxu0 0
    %434 = vmatpush2.bf16.xpose.msra.mxu0 0
    %435 = vmatprep.subr.bf16.mxu0 0
    %436 = vmatpush2.bf16.xpose.msra.mxu0 0
    %437 = vmatprep.subr.bf16.mxu0 0
    %438 = vmatpush2.bf16.xpose.msra.mxu0 0
    %439 = vmatprep.subr.bf16.mxu0 0
    %440 = vmatpush2.bf16.xpose.msra.mxu0 0
    %441 = vmatprep.subr.bf16.mxu0 0
    %442 = vmatpush2.bf16.xpose.msra.mxu0 0
    %443 = vmatprep.subr.bf16.mxu0 0
    %444 = vmatpush2.bf16.xpose.msra.mxu0 0
    %445 = vmatprep.subr.bf16.mxu0 0
    %446 = vmatpush2.bf16.xpose.msra.mxu0 0
    %447 = vmatprep.subr.bf16.mxu0 0
    %448 = vmatpush2.bf16.xpose.msra.mxu0 0
    %449 = vmatprep.mubr.bf16.mxu0 0
    %450 = vmatmul.mubr.bf16.gmra.mxu0 %v412
    %v451 = vpop.f32.mrf.mxu0
    %v452 = vadd.f32 0.0, %v451
    %v453 = vpop.f32.mrf.mxu0
    %v454 = vpop.f32.mrf.mxu0
    %v455 = vpop.f32.mrf.mxu0
    %456 = vdwg.mxu0
    %v458 = vsel %vm128, %v341, 0
    %460 = vmatprep.subr.bf16.mxu0 0
    %461 = vmatpush1.bf16.xpose.msra.mxu0 0
    %462 = vmatprep.subr.bf16.mxu0 0
    %463 = vmatpush1.bf16.xpose.msra.mxu0 0
    %464 = vmatprep.subr.bf16.mxu0 0
    %465 = vmatpush1.bf16.xpose.msra.mxu0 0
    %466 = vmatprep.subr.bf16.mxu0 0
    %467 = vmatpush1.bf16.xpose.msra.mxu0 0
    %468 = vmatprep.subr.bf16.mxu0 0
    %469 = vmatpush1.bf16.xpose.msra.mxu0 0
    %470 = vmatprep.subr.bf16.mxu0 0
    %471 = vmatpush1.bf16.xpose.msra.mxu0 0
    %472 = vmatprep.subr.bf16.mxu0 0
    %473 = vmatpush1.bf16.xpose.msra.mxu0 0
    %474 = vmatprep.subr.bf16.mxu0 0
    %475 = vmatpush1.bf16.xpose.msra.mxu0 %v369
    %476 = vmatprep.subr.bf16.mxu0 0
    %477 = vmatpush2.bf16.xpose.msra.mxu0 0
    %478 = vmatprep.subr.bf16.mxu0 0
    %479 = vmatpush2.bf16.xpose.msra.mxu0 0
    %480 = vmatprep.subr.bf16.mxu0 0
    %481 = vmatpush2.bf16.xpose.msra.mxu0 0
    %482 = vmatprep.subr.bf16.mxu0 0
    %483 = vmatpush2.bf16.xpose.msra.mxu0 0
    %484 = vmatprep.subr.bf16.mxu0 0
    %485 = vmatpush2.bf16.xpose.msra.mxu0 0
    %486 = vmatprep.subr.bf16.mxu0 0
    %487 = vmatpush2.bf16.xpose.msra.mxu0 0
    %488 = vmatprep.subr.bf16.mxu0 0
    %489 = vmatpush2.bf16.xpose.msra.mxu0 0
    %490 = vmatprep.subr.bf16.mxu0 0
    %491 = vmatpush2.bf16.xpose.msra.mxu0 0
    %492 = vmatprep.mubr.bf16.mxu0 0
    %493 = vmatmul.mubr.bf16.gmra.mxu0 %v458
    %v494 = vpop.f32.mrf.mxu0
    %v495 = vadd.f32 0.0, %v494
    %v496 = vpop.f32.mrf.mxu0
    %v497 = vpop.f32.mrf.mxu0
    %v498 = vpop.f32.mrf.mxu0
    %499 = vdwg.mxu0
    %v501 = vsel %vm128, %v342, 0
    %503 = vmatprep.subr.bf16.mxu0 0
    %504 = vmatpush1.bf16.xpose.msra.mxu0 0
    %505 = vmatprep.subr.bf16.mxu0 0
    %506 = vmatpush1.bf16.xpose.msra.mxu0 0
    %507 = vmatprep.subr.bf16.mxu0 0
    %508 = vmatpush1.bf16.xpose.msra.mxu0 0
    %509 = vmatprep.subr.bf16.mxu0 0
    %510 = vmatpush1.bf16.xpose.msra.mxu0 0
    %511 = vmatprep.subr.bf16.mxu0 0
    %512 = vmatpush1.bf16.xpose.msra.mxu0 0
    %513 = vmatprep.subr.bf16.mxu0 0
    %514 = vmatpush1.bf16.xpose.msra.mxu0 0
    %515 = vmatprep.subr.bf16.mxu0 0
    %516 = vmatpush1.bf16.xpose.msra.mxu0 0
    %517 = vmatprep.subr.bf16.mxu0 0
    %518 = vmatpush1.bf16.xpose.msra.mxu0 %v415
    %519 = vmatprep.subr.bf16.mxu0 0
    %520 = vmatpush2.bf16.xpose.msra.mxu0 0
    %521 = vmatprep.subr.bf16.mxu0 0
    %522 = vmatpush2.bf16.xpose.msra.mxu0 0
    %523 = vmatprep.subr.bf16.mxu0 0
    %524 = vmatpush2.bf16.xpose.msra.mxu0 0
    %525 = vmatprep.subr.bf16.mxu0 0
    %526 = vmatpush2.bf16.xpose.msra.mxu0 0
    %527 = vmatprep.subr.bf16.mxu0 0
    %528 = vmatpush2.bf16.xpose.msra.mxu0 0
    %529 = vmatprep.subr.bf16.mxu0 0
    %530 = vmatpush2.bf16.xpose.msra.mxu0 0
    %531 = vmatprep.subr.bf16.mxu0 0
    %532 = vmatpush2.bf16.xpose.msra.mxu0 0
    %533 = vmatprep.subr.bf16.mxu0 0
    %534 = vmatpush2.bf16.xpose.msra.mxu0 0
    %535 = vmatprep.mubr.bf16.mxu0 0
    %536 = vmatmul.mubr.bf16.gmra.mxu0 %v501
    %v537 = vpop.f32.mrf.mxu0
    %v538 = vadd.f32 0.0, %v537
    %v539 = vpop.f32.mrf.mxu0
    %v540 = vpop.f32.mrf.mxu0
    %v541 = vpop.f32.mrf.mxu0
    %542 = vdwg.mxu0
    %v544 = vsel %vm128, %v343, 0
    %546 = vmatprep.subr.bf16.mxu0 0
    %547 = vmatpush1.bf16.xpose.msra.mxu0 0
    %548 = vmatprep.subr.bf16.mxu0 0
    %549 = vmatpush1.bf16.xpose.msra.mxu0 0
    %550 = vmatprep.subr.bf16.mxu0 0
    %551 = vmatpush1.bf16.xpose.msra.mxu0 0
    %552 = vmatprep.subr.bf16.mxu0 0
    %553 = vmatpush1.bf16.xpose.msra.mxu0 0
    %554 = vmatprep.subr.bf16.mxu0 0
    %555 = vmatpush1.bf16.xpose.msra.mxu0 0
    %556 = vmatprep.subr.bf16.mxu0 0
    %557 = vmatpush1.bf16.xpose.msra.mxu0 0
    %558 = vmatprep.subr.bf16.mxu0 0
    %559 = vmatpush1.bf16.xpose.msra.mxu0 0
    %560 = vmatprep.subr.bf16.mxu0 0
    %561 = vmatpush1.bf16.xpose.msra.mxu0 %v369
    %562 = vmatprep.subr.bf16.mxu0 0
    %563 = vmatpush2.bf16.xpose.msra.mxu0 0
    %564 = vmatprep.subr.bf16.mxu0 0
    %565 = vmatpush2.bf16.xpose.msra.mxu0 0
    %566 = vmatprep.subr.bf16.mxu0 0
    %567 = vmatpush2.bf16.xpose.msra.mxu0 0
    %568 = vmatprep.subr.bf16.mxu0 0
    %569 = vmatpush2.bf16.xpose.msra.mxu0 0
    %570 = vmatprep.subr.bf16.mxu0 0
    %571 = vmatpush2.bf16.xpose.msra.mxu0 0
    %572 = vmatprep.subr.bf16.mxu0 0
    %573 = vmatpush2.bf16.xpose.msra.mxu0 0
    %574 = vmatprep.subr.bf16.mxu0 0
    %575 = vmatpush2.bf16.xpose.msra.mxu0 0
    %576 = vmatprep.subr.bf16.mxu0 0
    %577 = vmatpush2.bf16.xpose.msra.mxu0 0
    %578 = vmatprep.mubr.bf16.mxu0 0
    %579 = vmatmul.mubr.bf16.gmra.mxu0 %v544
    %v580 = vpop.f32.mrf.mxu0
    %v581 = vadd.f32 0.0, %v580
    %v582 = vpop.f32.mrf.mxu0
    %v583 = vpop.f32.mrf.mxu0
    %v584 = vpop.f32.mrf.mxu0
    %585 = vdwg.mxu0
    %v587 = vsel %vm128, %v344, 0
    %589 = vmatprep.subr.bf16.mxu0 0
    %590 = vmatpush1.bf16.xpose.msra.mxu0 0
    %591 = vmatprep.subr.bf16.mxu0 0
    %592 = vmatpush1.bf16.xpose.msra.mxu0 0
    %593 = vmatprep.subr.bf16.mxu0 0
    %594 = vmatpush1.bf16.xpose.msra.mxu0 0
    %595 = vmatprep.subr.bf16.mxu0 0
    %596 = vmatpush1.bf16.xpose.msra.mxu0 0
    %597 = vmatprep.subr.bf16.mxu0 0
    %598 = vmatpush1.bf16.xpose.msra.mxu0 0
    %599 = vmatprep.subr.bf16.mxu0 0
    %600 = vmatpush1.bf16.xpose.msra.mxu0 0
    %601 = vmatprep.subr.bf16.mxu0 0
    %602 = vmatpush1.bf16.xpose.msra.mxu0 0
    %603 = vmatprep.subr.bf16.mxu0 0
    %604 = vmatpush1.bf16.xpose.msra.mxu0 %v415
    %605 = vmatprep.subr.bf16.mxu0 0
    %606 = vmatpush2.bf16.xpose.msra.mxu0 0
    %607 = vmatprep.subr.bf16.mxu0 0
    %608 = vmatpush2.bf16.xpose.msra.mxu0 0
    %609 = vmatprep.subr.bf16.mxu0 0
    %610 = vmatpush2.bf16.xpose.msra.mxu0 0
    %611 = vmatprep.subr.bf16.mxu0 0
    %612 = vmatpush2.bf16.xpose.msra.mxu0 0
    %613 = vmatprep.subr.bf16.mxu0 0
    %614 = vmatpush2.bf16.xpose.msra.mxu0 0
    %615 = vmatprep.subr.bf16.mxu0 0
    %616 = vmatpush2.bf16.xpose.msra.mxu0 0
    %617 = vmatprep.subr.bf16.mxu0 0
    %618 = vmatpush2.bf16.xpose.msra.mxu0 0
    %619 = vmatprep.subr.bf16.mxu0 0
    %620 = vmatpush2.bf16.xpose.msra.mxu0 0
    %621 = vmatprep.mubr.bf16.mxu0 0
    %622 = vmatmul.mubr.bf16.gmra.mxu0 %v587
    %v623 = vpop.f32.mrf.mxu0
    %v624 = vadd.f32 0.0, %v623
    %v625 = vpop.f32.mrf.mxu0
    %v626 = vpop.f32.mrf.mxu0
    %v627 = vpop.f32.mrf.mxu0
    %628 = vdwg.mxu0
    %v630 = vsel %vm128, %v345, 0
    %632 = vmatprep.subr.bf16.mxu0 0
    %633 = vmatpush1.bf16.xpose.msra.mxu0 0
    %634 = vmatprep.subr.bf16.mxu0 0
    %635 = vmatpush1.bf16.xpose.msra.mxu0 0
    %636 = vmatprep.subr.bf16.mxu0 0
    %637 = vmatpush1.bf16.xpose.msra.mxu0 0
    %638 = vmatprep.subr.bf16.mxu0 0
    %639 = vmatpush1.bf16.xpose.msra.mxu0 0
    %640 = vmatprep.subr.bf16.mxu0 0
    %641 = vmatpush1.bf16.xpose.msra.mxu0 0
    %642 = vmatprep.subr.bf16.mxu0 0
    %643 = vmatpush1.bf16.xpose.msra.mxu0 0
    %644 = vmatprep.subr.bf16.mxu0 0
    %645 = vmatpush1.bf16.xpose.msra.mxu0 0
    %646 = vmatprep.subr.bf16.mxu0 0
    %647 = vmatpush1.bf16.xpose.msra.mxu0 %v369
    %648 = vmatprep.subr.bf16.mxu0 0
    %649 = vmatpush2.bf16.xpose.msra.mxu0 0
    %650 = vmatprep.subr.bf16.mxu0 0
    %651 = vmatpush2.bf16.xpose.msra.mxu0 0
    %652 = vmatprep.subr.bf16.mxu0 0
    %653 = vmatpush2.bf16.xpose.msra.mxu0 0
    %654 = vmatprep.subr.bf16.mxu0 0
    %655 = vmatpush2.bf16.xpose.msra.mxu0 0
    %656 = vmatprep.subr.bf16.mxu0 0
    %657 = vmatpush2.bf16.xpose.msra.mxu0 0
    %658 = vmatprep.subr.bf16.mxu0 0
    %659 = vmatpush2.bf16.xpose.msra.mxu0 0
    %660 = vmatprep.subr.bf16.mxu0 0
    %661 = vmatpush2.bf16.xpose.msra.mxu0 0
    %662 = vmatprep.subr.bf16.mxu0 0
    %663 = vmatpush2.bf16.xpose.msra.mxu0 0
    %664 = vmatprep.mubr.bf16.mxu0 0
    %665 = vmatmul.mubr.bf16.gmra.mxu0 %v630
    %v666 = vpop.f32.mrf.mxu0
    %v667 = vadd.f32 0.0, %v666
    %v668 = vpop.f32.mrf.mxu0
    %v669 = vpop.f32.mrf.mxu0
    %v670 = vpop.f32.mrf.mxu0
    %671 = vdwg.mxu0
    %v673 = vsel %vm128, %v346, 0
    %675 = vmatprep.subr.bf16.mxu0 0
    %676 = vmatpush1.bf16.xpose.msra.mxu0 0
    %677 = vmatprep.subr.bf16.mxu0 0
    %678 = vmatpush1.bf16.xpose.msra.mxu0 0
    %679 = vmatprep.subr.bf16.mxu0 0
    %680 = vmatpush1.bf16.xpose.msra.mxu0 0
    %681 = vmatprep.subr.bf16.mxu0 0
    %682 = vmatpush1.bf16.xpose.msra.mxu0 0
    %683 = vmatprep.subr.bf16.mxu0 0
    %684 = vmatpush1.bf16.xpose.msra.mxu0 0
    %685 = vmatprep.subr.bf16.mxu0 0
    %686 = vmatpush1.bf16.xpose.msra.mxu0 0
    %687 = vmatprep.subr.bf16.mxu0 0
    %688 = vmatpush1.bf16.xpose.msra.mxu0 0
    %689 = vmatprep.subr.bf16.mxu0 0
    %690 = vmatpush1.bf16.xpose.msra.mxu0 %v415
    %691 = vmatprep.subr.bf16.mxu0 0
    %692 = vmatpush2.bf16.xpose.msra.mxu0 0
    %693 = vmatprep.subr.bf16.mxu0 0
    %694 = vmatpush2.bf16.xpose.msra.mxu0 0
    %695 = vmatprep.subr.bf16.mxu0 0
    %696 = vmatpush2.bf16.xpose.msra.mxu0 0
    %697 = vmatprep.subr.bf16.mxu0 0
    %698 = vmatpush2.bf16.xpose.msra.mxu0 0
    %699 = vmatprep.subr.bf16.mxu0 0
    %700 = vmatpush2.bf16.xpose.msra.mxu0 0
    %701 = vmatprep.subr.bf16.mxu0 0
    %702 = vmatpush2.bf16.xpose.msra.mxu0 0
    %703 = vmatprep.subr.bf16.mxu0 0
    %704 = vmatpush2.bf16.xpose.msra.mxu0 0
    %705 = vmatprep.subr.bf16.mxu0 0
    %706 = vmatpush2.bf16.xpose.msra.mxu0 0
    %707 = vmatprep.mubr.bf16.mxu0 0
    %708 = vmatmul.mubr.bf16.gmra.mxu0 %v673
    %v709 = vpop.f32.mrf.mxu0
    %v710 = vadd.f32 0.0, %v709
    %v711 = vpop.f32.mrf.mxu0
    %v712 = vpop.f32.mrf.mxu0
    %v713 = vpop.f32.mrf.mxu0
    %714 = vdwg.mxu0
    %vm715 = vcmask 64512
    %v716 = vsel %vm715, %v406, -inf
    %717 = vmax.xlane.f32.xlu0 %v716
    %v718 = vpop.xlane.xlu0 %717
    %v719 = vsel %vm715, %v452, -inf
    %720 = vmax.xlane.f32.xlu0 %v719
    %v721 = vpop.xlane.xlu0 %720
    %v722 = vsel %vm715, %v495, -inf
    %723 = vmax.xlane.f32.xlu0 %v722
    %v724 = vpop.xlane.xlu0 %723
    %v725 = vsel %vm715, %v538, -inf
    %726 = vmax.xlane.f32.xlu0 %v725
    %v727 = vpop.xlane.xlu0 %726
    %v728 = vsel %vm715, %v581, -inf
    %729 = vmax.xlane.f32.xlu0 %v728
    %v730 = vpop.xlane.xlu0 %729
    %v731 = vsel %vm715, %v624, -inf
    %732 = vmax.xlane.f32.xlu0 %v731
    %v733 = vpop.xlane.xlu0 %732
    %v734 = vsel %vm715, %v667, -inf
    %735 = vmax.xlane.f32.xlu0 %v734
    %v736 = vpop.xlane.xlu0 %735
    %v737 = vsel %vm715, %v710, -inf
    %738 = vmax.xlane.f32.xlu0 %v737
    %v739 = vpop.xlane.xlu0 %738
    %v740 = vsub.f32 %v406, %v718
    %v741 = vsub.f32 %v452, %v721
    %v742 = vsub.f32 %v495, %v724
    %v743 = vsub.f32 %v538, %v727
    %v744 = vsub.f32 %v581, %v730
    %v745 = vsub.f32 %v624, %v733
    %v746 = vsub.f32 %v667, %v736
    %v747 = vsub.f32 %v710, %v739
    %v748 = vmul.f32 %v740, 1.442695
    %v749 = vpow.pop %v748
    %v750 = vmul.f32 %v741, 1.442695
    %v751 = vpow.pop %v750
    %v752 = vmul.f32 %v742, 1.442695
    %v753 = vpow.pop %v752
    %v754 = vmul.f32 %v743, 1.442695
    %v755 = vpow.pop %v754
    %v756 = vmul.f32 %v744, 1.442695
    %v757 = vpow.pop %v756
    %v758 = vmul.f32 %v745, 1.442695
    %v759 = vpow.pop %v758
    %v760 = vmul.f32 %v746, 1.442695
    %v761 = vpow.pop %v760
    %v762 = vmul.f32 %v747, 1.442695
    %v763 = vpow.pop %v762
    %v764 = vsel %vm715, %v749, 0.0
    %765 = vadd.xlane.f32.xlu0 %v764
    %v766 = vpop.xlane.xlu0 %765
    %v767 = vsel %vm715, %v751, 0.0
    %768 = vadd.xlane.f32.xlu0 %v767
    %v769 = vpop.xlane.xlu0 %768
    %v770 = vsel %vm715, %v753, 0.0
    %771 = vadd.xlane.f32.xlu0 %v770
    %v772 = vpop.xlane.xlu0 %771
    %v773 = vsel %vm715, %v755, 0.0
    %774 = vadd.xlane.f32.xlu0 %v773
    %v775 = vpop.xlane.xlu0 %774
    %v776 = vsel %vm715, %v757, 0.0
    %777 = vadd.xlane.f32.xlu0 %v776
    %v778 = vpop.xlane.xlu0 %777
    %v779 = vsel %vm715, %v759, 0.0
    %780 = vadd.xlane.f32.xlu0 %v779
    %v781 = vpop.xlane.xlu0 %780
    %v782 = vsel %vm715, %v761, 0.0
    %783 = vadd.xlane.f32.xlu0 %v782
    %v784 = vpop.xlane.xlu0 %783
    %v785 = vsel %vm715, %v763, 0.0
    %786 = vadd.xlane.f32.xlu0 %v785
    %v787 = vpop.xlane.xlu0 %786
    %v788 = vrcp.pop %v766
    %v789 = vmul.f32 %v749, %v788
    %v790 = vrcp.pop %v769
    %v791 = vmul.f32 %v751, %v790
    %v792 = vrcp.pop %v772
    %v793 = vmul.f32 %v753, %v792
    %v794 = vrcp.pop %v775
    %v795 = vmul.f32 %v755, %v794
    %v796 = vrcp.pop %v778
    %v797 = vmul.f32 %v757, %v796
    %v798 = vrcp.pop %v781
    %v799 = vmul.f32 %v759, %v798
    %v800 = vrcp.pop %v784
    %v801 = vmul.f32 %v761, %v800
    %v802 = vrcp.pop %v787
    %v803 = vmul.f32 %v763, %v802
    %v804 = vpack.c.bf16 %v789, %v789
    %v805 = vpack.c.bf16 %v791, %v791
    %v806 = vpack.c.bf16 %v793, %v793
    %v807 = vpack.c.bf16 %v795, %v795
    %v808 = vpack.c.bf16 %v797, %v797
    %v809 = vpack.c.bf16 %v799, %v799
    %v810 = vpack.c.bf16 %v801, %v801
    %v811 = vpack.c.bf16 %v803, %v803
    %v813 = vsel %vm715, %v804, 0
    %vm815 = vcmask 1043456
    %v817 = vsel %vm815, %v357, 0
    %819 = vmatprep.subr.bf16.mxu0 0
    %820 = vmatpush1.bf16.msra.mxu0 0
    %821 = vmatprep.subr.bf16.mxu0 0
    %822 = vmatpush1.bf16.msra.mxu0 0
    %823 = vmatprep.subr.bf16.mxu0 0
    %824 = vmatpush1.bf16.msra.mxu0 0
    %825 = vmatprep.subr.bf16.mxu0 0
    %826 = vmatpush1.bf16.msra.mxu0 0
    %827 = vmatprep.subr.bf16.mxu0 0
    %828 = vmatpush1.bf16.msra.mxu0 0
    %829 = vmatprep.subr.bf16.mxu0 0
    %830 = vmatpush1.bf16.msra.mxu0 0
    %831 = vmatprep.subr.bf16.mxu0 0
    %832 = vmatpush1.bf16.msra.mxu0 0
    %833 = vmatprep.subr.bf16.mxu0 0
    %834 = vmatpush1.bf16.msra.mxu0 %v817
    %835 = vmatprep.subr.bf16.mxu0 0
    %836 = vmatpush2.bf16.msra.mxu0 0
    %837 = vmatprep.subr.bf16.mxu0 0
    %838 = vmatpush2.bf16.msra.mxu0 0
    %839 = vmatprep.subr.bf16.mxu0 0
    %840 = vmatpush2.bf16.msra.mxu0 0
    %841 = vmatprep.subr.bf16.mxu0 0
    %842 = vmatpush2.bf16.msra.mxu0 0
    %843 = vmatprep.subr.bf16.mxu0 0
    %844 = vmatpush2.bf16.msra.mxu0 0
    %845 = vmatprep.subr.bf16.mxu0 0
    %846 = vmatpush2.bf16.msra.mxu0 0
    %847 = vmatprep.subr.bf16.mxu0 0
    %848 = vmatpush2.bf16.msra.mxu0 0
    %849 = vmatprep.subr.bf16.mxu0 0
    %850 = vmatpush2.bf16.msra.mxu0 0
    %851 = vmatprep.mubr.bf16.mxu0 0
    %852 = vmatmul.mubr.bf16.gmra.mxu0 %v813
    %v853 = vpop.f32.mrf.mxu0
    %v854 = vadd.f32 0.0, %v853
    %v855 = vpop.f32.mrf.mxu0
    %v856 = vpop.f32.mrf.mxu0
    %v857 = vpop.f32.mrf.mxu0
    %858 = vdwg.mxu0
    %v860 = vsel %vm715, %v805, 0
    %v863 = vsel %vm815, %v358, 0
    %865 = vmatprep.subr.bf16.mxu0 0
    %866 = vmatpush1.bf16.msra.mxu0 0
    %867 = vmatprep.subr.bf16.mxu0 0
    %868 = vmatpush1.bf16.msra.mxu0 0
    %869 = vmatprep.subr.bf16.mxu0 0
    %870 = vmatpush1.bf16.msra.mxu0 0
    %871 = vmatprep.subr.bf16.mxu0 0
    %872 = vmatpush1.bf16.msra.mxu0 0
    %873 = vmatprep.subr.bf16.mxu0 0
    %874 = vmatpush1.bf16.msra.mxu0 0
    %875 = vmatprep.subr.bf16.mxu0 0
    %876 = vmatpush1.bf16.msra.mxu0 0
    %877 = vmatprep.subr.bf16.mxu0 0
    %878 = vmatpush1.bf16.msra.mxu0 0
    %879 = vmatprep.subr.bf16.mxu0 0
    %880 = vmatpush1.bf16.msra.mxu0 %v863
    %881 = vmatprep.subr.bf16.mxu0 0
    %882 = vmatpush2.bf16.msra.mxu0 0
    %883 = vmatprep.subr.bf16.mxu0 0
    %884 = vmatpush2.bf16.msra.mxu0 0
    %885 = vmatprep.subr.bf16.mxu0 0
    %886 = vmatpush2.bf16.msra.mxu0 0
    %887 = vmatprep.subr.bf16.mxu0 0
    %888 = vmatpush2.bf16.msra.mxu0 0
    %889 = vmatprep.subr.bf16.mxu0 0
    %890 = vmatpush2.bf16.msra.mxu0 0
    %891 = vmatprep.subr.bf16.mxu0 0
    %892 = vmatpush2.bf16.msra.mxu0 0
    %893 = vmatprep.subr.bf16.mxu0 0
    %894 = vmatpush2.bf16.msra.mxu0 0
    %895 = vmatprep.subr.bf16.mxu0 0
    %896 = vmatpush2.bf16.msra.mxu0 0
    %897 = vmatprep.mubr.bf16.mxu0 0
    %898 = vmatmul.mubr.bf16.gmra.mxu0 %v860
    %v899 = vpop.f32.mrf.mxu0
    %v900 = vadd.f32 0.0, %v899
    %v901 = vpop.f32.mrf.mxu0
    %v902 = vpop.f32.mrf.mxu0
    %v903 = vpop.f32.mrf.mxu0
    %904 = vdwg.mxu0
    %v906 = vsel %vm715, %v806, 0
    %v909 = vsel %vm815, %v359, 0
    %911 = vmatprep.subr.bf16.mxu0 0
    %912 = vmatpush1.bf16.msra.mxu0 0
    %913 = vmatprep.subr.bf16.mxu0 0
    %914 = vmatpush1.bf16.msra.mxu0 0
    %915 = vmatprep.subr.bf16.mxu0 0
    %916 = vmatpush1.bf16.msra.mxu0 0
    %917 = vmatprep.subr.bf16.mxu0 0
    %918 = vmatpush1.bf16.msra.mxu0 0
    %919 = vmatprep.subr.bf16.mxu0 0
    %920 = vmatpush1.bf16.msra.mxu0 0
    %921 = vmatprep.subr.bf16.mxu0 0
    %922 = vmatpush1.bf16.msra.mxu0 0
    %923 = vmatprep.subr.bf16.mxu0 0
    %924 = vmatpush1.bf16.msra.mxu0 0
    %925 = vmatprep.subr.bf16.mxu0 0
    %926 = vmatpush1.bf16.msra.mxu0 %v909
    %927 = vmatprep.subr.bf16.mxu0 0
    %928 = vmatpush2.bf16.msra.mxu0 0
    %929 = vmatprep.subr.bf16.mxu0 0
    %930 = vmatpush2.bf16.msra.mxu0 0
    %931 = vmatprep.subr.bf16.mxu0 0
    %932 = vmatpush2.bf16.msra.mxu0 0
    %933 = vmatprep.subr.bf16.mxu0 0
    %934 = vmatpush2.bf16.msra.mxu0 0
    %935 = vmatprep.subr.bf16.mxu0 0
    %936 = vmatpush2.bf16.msra.mxu0 0
    %937 = vmatprep.subr.bf16.mxu0 0
    %938 = vmatpush2.bf16.msra.mxu0 0
    %939 = vmatprep.subr.bf16.mxu0 0
    %940 = vmatpush2.bf16.msra.mxu0 0
    %941 = vmatprep.subr.bf16.mxu0 0
    %942 = vmatpush2.bf16.msra.mxu0 0
    %943 = vmatprep.mubr.bf16.mxu0 0
    %944 = vmatmul.mubr.bf16.gmra.mxu0 %v906
    %v945 = vpop.f32.mrf.mxu0
    %v946 = vadd.f32 0.0, %v945
    %v947 = vpop.f32.mrf.mxu0
    %v948 = vpop.f32.mrf.mxu0
    %v949 = vpop.f32.mrf.mxu0
    %950 = vdwg.mxu0
    %v952 = vsel %vm715, %v807, 0
    %v955 = vsel %vm815, %v360, 0
    %957 = vmatprep.subr.bf16.mxu0 0
    %958 = vmatpush1.bf16.msra.mxu0 0
    %959 = vmatprep.subr.bf16.mxu0 0
    %960 = vmatpush1.bf16.msra.mxu0 0
    %961 = vmatprep.subr.bf16.mxu0 0
    %962 = vmatpush1.bf16.msra.mxu0 0
    %963 = vmatprep.subr.bf16.mxu0 0
    %964 = vmatpush1.bf16.msra.mxu0 0
    %965 = vmatprep.subr.bf16.mxu0 0
    %966 = vmatpush1.bf16.msra.mxu0 0
    %967 = vmatprep.subr.bf16.mxu0 0
    %968 = vmatpush1.bf16.msra.mxu0 0
    %969 = vmatprep.subr.bf16.mxu0 0
    %970 = vmatpush1.bf16.msra.mxu0 0
    %971 = vmatprep.subr.bf16.mxu0 0
    %972 = vmatpush1.bf16.msra.mxu0 %v955
    %973 = vmatprep.subr.bf16.mxu0 0
    %974 = vmatpush2.bf16.msra.mxu0 0
    %975 = vmatprep.subr.bf16.mxu0 0
    %976 = vmatpush2.bf16.msra.mxu0 0
    %977 = vmatprep.subr.bf16.mxu0 0
    %978 = vmatpush2.bf16.msra.mxu0 0
    %979 = vmatprep.subr.bf16.mxu0 0
    %980 = vmatpush2.bf16.msra.mxu0 0
    %981 = vmatprep.subr.bf16.mxu0 0
    %982 = vmatpush2.bf16.msra.mxu0 0
    %983 = vmatprep.subr.bf16.mxu0 0
    %984 = vmatpush2.bf16.msra.mxu0 0
    %985 = vmatprep.subr.bf16.mxu0 0
    %986 = vmatpush2.bf16.msra.mxu0 0
    %987 = vmatprep.subr.bf16.mxu0 0
    %988 = vmatpush2.bf16.msra.mxu0 0
    %989 = vmatprep.mubr.bf16.mxu0 0
    %990 = vmatmul.mubr.bf16.gmra.mxu0 %v952
    %v991 = vpop.f32.mrf.mxu0
    %v992 = vadd.f32 0.0, %v991
    %v993 = vpop.f32.mrf.mxu0
    %v994 = vpop.f32.mrf.mxu0
    %v995 = vpop.f32.mrf.mxu0
    %996 = vdwg.mxu0
    %v998 = vsel %vm715, %v808, 0
    %v1001 = vsel %vm815, %v361, 0
    %1003 = vmatprep.subr.bf16.mxu0 0
    %1004 = vmatpush1.bf16.msra.mxu0 0
    %1005 = vmatprep.subr.bf16.mxu0 0
    %1006 = vmatpush1.bf16.msra.mxu0 0
    %1007 = vmatprep.subr.bf16.mxu0 0
    %1008 = vmatpush1.bf16.msra.mxu0 0
    %1009 = vmatprep.subr.bf16.mxu0 0
    %1010 = vmatpush1.bf16.msra.mxu0 0
    %1011 = vmatprep.subr.bf16.mxu0 0
    %1012 = vmatpush1.bf16.msra.mxu0 0
    %1013 = vmatprep.subr.bf16.mxu0 0
    %1014 = vmatpush1.bf16.msra.mxu0 0
    %1015 = vmatprep.subr.bf16.mxu0 0
    %1016 = vmatpush1.bf16.msra.mxu0 0
    %1017 = vmatprep.subr.bf16.mxu0 0
    %1018 = vmatpush1.bf16.msra.mxu0 %v1001
    %1019 = vmatprep.subr.bf16.mxu0 0
    %1020 = vmatpush2.bf16.msra.mxu0 0
    %1021 = vmatprep.subr.bf16.mxu0 0
    %1022 = vmatpush2.bf16.msra.mxu0 0
    %1023 = vmatprep.subr.bf16.mxu0 0
    %1024 = vmatpush2.bf16.msra.mxu0 0
    %1025 = vmatprep.subr.bf16.mxu0 0
    %1026 = vmatpush2.bf16.msra.mxu0 0
    %1027 = vmatprep.subr.bf16.mxu0 0
    %1028 = vmatpush2.bf16.msra.mxu0 0
    %1029 = vmatprep.subr.bf16.mxu0 0
    %1030 = vmatpush2.bf16.msra.mxu0 0
    %1031 = vmatprep.subr.bf16.mxu0 0
    %1032 = vmatpush2.bf16.msra.mxu0 0
    %1033 = vmatprep.subr.bf16.mxu0 0
    %1034 = vmatpush2.bf16.msra.mxu0 0
    %1035 = vmatprep.mubr.bf16.mxu0 0
    %1036 = vmatmul.mubr.bf16.gmra.mxu0 %v998
    %v1037 = vpop.f32.mrf.mxu0
    %v1038 = vadd.f32 0.0, %v1037
    %v1039 = vpop.f32.mrf.mxu0
    %v1040 = vpop.f32.mrf.mxu0
    %v1041 = vpop.f32.mrf.mxu0
    %1042 = vdwg.mxu0
    %v1044 = vsel %vm715, %v809, 0
    %v1047 = vsel %vm815, %v362, 0
    %1049 = vmatprep.subr.bf16.mxu0 0
    %1050 = vmatpush1.bf16.msra.mxu0 0
    %1051 = vmatprep.subr.bf16.mxu0 0
    %1052 = vmatpush1.bf16.msra.mxu0 0
    %1053 = vmatprep.subr.bf16.mxu0 0
    %1054 = vmatpush1.bf16.msra.mxu0 0
    %1055 = vmatprep.subr.bf16.mxu0 0
    %1056 = vmatpush1.bf16.msra.mxu0 0
    %1057 = vmatprep.subr.bf16.mxu0 0
    %1058 = vmatpush1.bf16.msra.mxu0 0
    %1059 = vmatprep.subr.bf16.mxu0 0
    %1060 = vmatpush1.bf16.msra.mxu0 0
    %1061 = vmatprep.subr.bf16.mxu0 0
    %1062 = vmatpush1.bf16.msra.mxu0 0
    %1063 = vmatprep.subr.bf16.mxu0 0
    %1064 = vmatpush1.bf16.msra.mxu0 %v1047
    %1065 = vmatprep.subr.bf16.mxu0 0
    %1066 = vmatpush2.bf16.msra.mxu0 0
    %1067 = vmatprep.subr.bf16.mxu0 0
    %1068 = vmatpush2.bf16.msra.mxu0 0
    %1069 = vmatprep.subr.bf16.mxu0 0
    %1070 = vmatpush2.bf16.msra.mxu0 0
    %1071 = vmatprep.subr.bf16.mxu0 0
    %1072 = vmatpush2.bf16.msra.mxu0 0
    %1073 = vmatprep.subr.bf16.mxu0 0
    %1074 = vmatpush2.bf16.msra.mxu0 0
    %1075 = vmatprep.subr.bf16.mxu0 0
    %1076 = vmatpush2.bf16.msra.mxu0 0
    %1077 = vmatprep.subr.bf16.mxu0 0
    %1078 = vmatpush2.bf16.msra.mxu0 0
    %1079 = vmatprep.subr.bf16.mxu0 0
    %1080 = vmatpush2.bf16.msra.mxu0 0
    %1081 = vmatprep.mubr.bf16.mxu0 0
    %1082 = vmatmul.mubr.bf16.gmra.mxu0 %v1044
    %v1083 = vpop.f32.mrf.mxu0
    %v1084 = vadd.f32 0.0, %v1083
    %v1085 = vpop.f32.mrf.mxu0
    %v1086 = vpop.f32.mrf.mxu0
    %v1087 = vpop.f32.mrf.mxu0
    %1088 = vdwg.mxu0
    %v1090 = vsel %vm715, %v810, 0
    %v1093 = vsel %vm815, %v363, 0
    %1095 = vmatprep.subr.bf16.mxu0 0
    %1096 = vmatpush1.bf16.msra.mxu0 0
    %1097 = vmatprep.subr.bf16.mxu0 0
    %1098 = vmatpush1.bf16.msra.mxu0 0
    %1099 = vmatprep.subr.bf16.mxu0 0
    %1100 = vmatpush1.bf16.msra.mxu0 0
    %1101 = vmatprep.subr.bf16.mxu0 0
    %1102 = vmatpush1.bf16.msra.mxu0 0
    %1103 = vmatprep.subr.bf16.mxu0 0
    %1104 = vmatpush1.bf16.msra.mxu0 0
    %1105 = vmatprep.subr.bf16.mxu0 0
    %1106 = vmatpush1.bf16.msra.mxu0 0
    %1107 = vmatprep.subr.bf16.mxu0 0
    %1108 = vmatpush1.bf16.msra.mxu0 0
    %1109 = vmatprep.subr.bf16.mxu0 0
    %1110 = vmatpush1.bf16.msra.mxu0 %v1093
    %1111 = vmatprep.subr.bf16.mxu0 0
    %1112 = vmatpush2.bf16.msra.mxu0 0
    %1113 = vmatprep.subr.bf16.mxu0 0
    %1114 = vmatpush2.bf16.msra.mxu0 0
    %1115 = vmatprep.subr.bf16.mxu0 0
    %1116 = vmatpush2.bf16.msra.mxu0 0
    %1117 = vmatprep.subr.bf16.mxu0 0
    %1118 = vmatpush2.bf16.msra.mxu0 0
    %1119 = vmatprep.subr.bf16.mxu0 0
    %1120 = vmatpush2.bf16.msra.mxu0 0
    %1121 = vmatprep.subr.bf16.mxu0 0
    %1122 = vmatpush2.bf16.msra.mxu0 0
    %1123 = vmatprep.subr.bf16.mxu0 0
    %1124 = vmatpush2.bf16.msra.mxu0 0
    %1125 = vmatprep.subr.bf16.mxu0 0
    %1126 = vmatpush2.bf16.msra.mxu0 0
    %1127 = vmatprep.mubr.bf16.mxu0 0
    %1128 = vmatmul.mubr.bf16.gmra.mxu0 %v1090
    %v1129 = vpop.f32.mrf.mxu0
    %v1130 = vadd.f32 0.0, %v1129
    %v1131 = vpop.f32.mrf.mxu0
    %v1132 = vpop.f32.mrf.mxu0
    %v1133 = vpop.f32.mrf.mxu0
    %1134 = vdwg.mxu0
    %v1136 = vsel %vm715, %v811, 0
    %v1139 = vsel %vm815, %v364, 0
    %1141 = vmatprep.subr.bf16.mxu0 0
    %1142 = vmatpush1.bf16.msra.mxu0 0
    %1143 = vmatprep.subr.bf16.mxu0 0
    %1144 = vmatpush1.bf16.msra.mxu0 0
    %1145 = vmatprep.subr.bf16.mxu0 0
    %1146 = vmatpush1.bf16.msra.mxu0 0
    %1147 = vmatprep.subr.bf16.mxu0 0
    %1148 = vmatpush1.bf16.msra.mxu0 0
    %1149 = vmatprep.subr.bf16.mxu0 0
    %1150 = vmatpush1.bf16.msra.mxu0 0
    %1151 = vmatprep.subr.bf16.mxu0 0
    %1152 = vmatpush1.bf16.msra.mxu0 0
    %1153 = vmatprep.subr.bf16.mxu0 0
    %1154 = vmatpush1.bf16.msra.mxu0 0
    %1155 = vmatprep.subr.bf16.mxu0 0
    %1156 = vmatpush1.bf16.msra.mxu0 %v1139
    %1157 = vmatprep.subr.bf16.mxu0 0
    %1158 = vmatpush2.bf16.msra.mxu0 0
    %1159 = vmatprep.subr.bf16.mxu0 0
    %1160 = vmatpush2.bf16.msra.mxu0 0
    %1161 = vmatprep.subr.bf16.mxu0 0
    %1162 = vmatpush2.bf16.msra.mxu0 0
    %1163 = vmatprep.subr.bf16.mxu0 0
    %1164 = vmatpush2.bf16.msra.mxu0 0
    %1165 = vmatprep.subr.bf16.mxu0 0
    %1166 = vmatpush2.bf16.msra.mxu0 0
    %1167 = vmatprep.subr.bf16.mxu0 0
    %1168 = vmatpush2.bf16.msra.mxu0 0
    %1169 = vmatprep.subr.bf16.mxu0 0
    %1170 = vmatpush2.bf16.msra.mxu0 0
    %1171 = vmatprep.subr.bf16.mxu0 0
    %1172 = vmatpush2.bf16.msra.mxu0 0
    %1173 = vmatprep.mubr.bf16.mxu0 0
    %1174 = vmatmul.mubr.bf16.gmra.mxu0 %v1136
    %v1175 = vpop.f32.mrf.mxu0
    %v1176 = vadd.f32 0.0, %v1175
    %v1177 = vpop.f32.mrf.mxu0
    %v1178 = vpop.f32.mrf.mxu0
    %v1179 = vpop.f32.mrf.mxu0
    %1180 = vdwg.mxu0
    %v1181 = vsel %vm128, %v854, 0.0
    %v1182 = vsel %vm128, %v946, 0.0
    %v1183 = vadd.f32 %v1181, %v1182
    %v1184 = vsel %vm128, %v1038, 0.0
    %v1185 = vadd.f32 %v1183, %v1184
    %v1186 = vsel %vm128, %v1130, 0.0
    %v1187 = vadd.f32 %v1185, %v1186
    %v1188 = vsel %vm128, %v900, 0.0
    %v1189 = vsel %vm128, %v992, 0.0
    %v1190 = vadd.f32 %v1188, %v1189
    %v1191 = vsel %vm128, %v1084, 0.0
    %v1192 = vadd.f32 %v1190, %v1191
    %v1193 = vsel %vm128, %v1176, 0.0
    %v1194 = vadd.f32 %v1192, %v1193
    %v1195 = vpack.c.bf16 %v1194, %v1187
    %v1196 = vld [vmem:[#allocation10] sm:$0xf]
    %v1197 = vld [vmem:[#allocation10 + $0x4] sm:$0xf]
    %v1198 = vld [vmem:[#allocation10 + $0x8] sm:$0xf]
    %v1199 = vld [vmem:[#allocation10 + $0xc] sm:$0xf]
    %v1200 = vld [vmem:[%s6] sm:$0x1]
    %v1202 = vlaneseq
    %v1203 = vshrl.u32 %v1202, 7
    %v1204 = vsub.s32 0, %v1203
    %v1205 = vrot.slane %v1200, %v1204
    %v1211 = vunpack.c.l.b16 %v1196
    %v1212 = vunpack.c.l.b16 %v1197
    %v1213 = vunpack.c.l.b16 %v1198
    %v1214 = vunpack.c.l.b16 %v1199
    %v1215 = vpack.c.b16 %v1212, %v1211
    %v1216 = vpack.c.b16 %v1214, %v1213
    %v1220 = vsel %vm128, %v1195, 0
    %1222 = vmatprep.subr.bf16.mxu0 0
    %1223 = vmatpush1.bf16.msra.mxu0 0
    %1224 = vmatprep.subr.bf16.mxu0 0
    %1225 = vmatpush1.bf16.msra.mxu0 0
    %1226 = vmatprep.subr.bf16.mxu0 0
    %1227 = vmatpush1.bf16.msra.mxu0 0
    %1228 = vmatprep.subr.bf16.mxu0 0
    %1229 = vmatpush1.bf16.msra.mxu0 0
    %1230 = vmatprep.subr.bf16.mxu0 0
    %1231 = vmatpush1.bf16.msra.mxu0 0
    %1232 = vmatprep.subr.bf16.mxu0 0
    %1233 = vmatpush1.bf16.msra.mxu0 0
    %1234 = vmatprep.subr.bf16.mxu0 0
    %1235 = vmatpush1.bf16.msra.mxu0 %v1216
    %1236 = vmatprep.subr.bf16.mxu0 0
    %1237 = vmatpush1.bf16.msra.mxu0 %v1215
    %1238 = vmatprep.subr.bf16.mxu0 0
    %1239 = vmatpush2.bf16.msra.mxu0 0
    %1240 = vmatprep.subr.bf16.mxu0 0
    %1241 = vmatpush2.bf16.msra.mxu0 0
    %1242 = vmatprep.subr.bf16.mxu0 0
    %1243 = vmatpush2.bf16.msra.mxu0 0
    %1244 = vmatprep.subr.bf16.mxu0 0
    %1245 = vmatpush2.bf16.msra.mxu0 0
    %1246 = vmatprep.subr.bf16.mxu0 0
    %1247 = vmatpush2.bf16.msra.mxu0 0
    %1248 = vmatprep.subr.bf16.mxu0 0
    %1249 = vmatpush2.bf16.msra.mxu0 0
    %1250 = vmatprep.subr.bf16.mxu0 0
    %1251 = vmatpush2.bf16.msra.mxu0 0
    %1252 = vmatprep.subr.bf16.mxu0 0
    %1253 = vmatpush2.bf16.msra.mxu0 0
    %1254 = vmatprep.mubr.bf16.mxu0 0
    %1255 = vmatmul.mubr.bf16.gmra.mxu0 %v1220
    %v1256 = vpop.f32.mrf.mxu0
    %v1257 = vadd.f32 %v1205, %v1256
    %v1258 = vpop.f32.mrf.mxu0
    %v1259 = vpop.f32.mrf.mxu0
    %v1260 = vadd.f32 %v1205, %v1259
    %v1261 = vpop.f32.mrf.mxu0
    %1262 = vdwg.mxu0
    %1263 = vst.msk [vmem:[#allocation11] sm:$0xff] %vm128, %v1257
    %1264 = vst.msk [vmem:[#allocation11 + $0x8] sm:$0xff] %vm128, %v1260
    %1267 = vrot.lane.b32.xlu0 %v793, 8
    %v1268 = vpop.permute.xlu0 %1267
    %1269 = vrot.lane.b32.xlu0 %v795, 8
    %v1270 = vpop.permute.xlu0 %1269
    %1275 = vrot.lane.b32.xlu0 %v797, 16
    %v1276 = vpop.permute.xlu0 %1275
    %1277 = vrot.lane.b32.xlu0 %v799, 16
    %v1278 = vpop.permute.xlu0 %1277
    %1283 = vrot.lane.b32.xlu0 %v801, 24
    %v1284 = vpop.permute.xlu0 %1283
    %1285 = vrot.lane.b32.xlu0 %v803, 24
    %v1286 = vpop.permute.xlu0 %1285
    %v1289 = vsel %vm715, %v789, %v1268
    %v1290 = vsel %vm715, %v791, %v1270
    %vm1291 = vcmask 130048
    %v1292 = vsel %vm1291, %v1289, %v1276
    %v1293 = vsel %vm1291, %v1290, %v1278
    %vm1294 = vcmask 195584
    %v1295 = vsel %vm1294, %v1292, %v1284
    %v1296 = vsel %vm1294, %v1293, %v1286
    %1297 = vst.msk [vmem:[#allocation12] sm:$0xff] %vm128, %v1295
    %1298 = vst.msk [vmem:[#allocation12 + $0x8] sm:$0xff] %vm128, %v1296
    // Predicated region
    $region54: #{tpu_custom_call.1} parent=1 // pred_check
      _
    $region55: #{tpu_custom_call.1} parent=1 // pred_check_branch
      %1300 = sbr.rel (0) target = $region57
    $region56: #{tpu_custom_call.1} parent=1 // pred_region
      %s1302 = ssub.s32 256, 256
      %1303 = vsyncadd [#allocation4], %s1302
      %s1304 = sshll.u32 [#allocation11], 4
      %s1305 = int_to_ptr.vmem [resolvable:$true] %s1304
      %1310 = dma.vmem_to_hbm [thread:$0]  %s1305, 256, %s8, [#allocation4], 128, 128, 8
    $region57: #{tpu_custom_call.1} parent=1 // pred_fallthru
      _
    // Predicated region
    $region58: #{tpu_custom_call.1} parent=1 // pred_check
      _
    $region59: #{tpu_custom_call.1} parent=1 // pred_check_branch
      %1312 = sbr.rel (0) target = $region61
    $region60: #{tpu_custom_call.1} parent=1 // pred_region
      %s1314 = ssub.s32 256, 256
      %1315 = vsyncadd [#allocation13], %s1314
      %s1316 = sshll.u32 [#allocation12], 4
      %s1317 = int_to_ptr.vmem [resolvable:$true] %s1316
      %1322 = dma.vmem_to_hbm [thread:$0]  %s1317, 256, %s9, [#allocation13], 128, 128, 8
    $region61: #{tpu_custom_call.1} parent=1 // pred_fallthru
      _
    // Predicated region
    $region62: #{tpu_custom_call.1} parent=1 // pred_check
      _
    $region63: #{tpu_custom_call.1} parent=1 // pred_check_branch
      %1324 = sbr.rel (0) target = $region65
    $region64: #{tpu_custom_call.1} parent=1 // pred_region
      %1325 = dma.done [#allocation4], 256
    $region65: #{tpu_custom_call.1} parent=1 // pred_fallthru
      _
    // Predicated region
    $region66: #{tpu_custom_call.1} parent=1 // pred_check
      _
    $region67: #{tpu_custom_call.1} parent=1 // pred_check_branch
      %1327 = sbr.rel (0) target = $region69
    $region68: #{tpu_custom_call.1} parent=1 // pred_region
      %1328 = dma.done [#allocation13], 256
    $region69: #{tpu_custom_call.1} parent=1 // pred_fallthru
      _
    %1329 = vsyncpa [#allocation3], 1
    %1330 = vsyncpa [#allocation6], 1
    %1331 = vsyncpa [#allocation9], 1
    %1332 = vsyncpa [#allocation4], 1
    %1333 = vsyncpa [#allocation13], 1

</llo_original>
